<compile_context>
chip_gen: v5e
topology: v5e:2x2
jax: 0.10.0
libtpu: 0.0.40
codegen_flags: <defaults>
</compile_context>

<pallas_src>
import jax
import jax.numpy as jnp
from jax.experimental import pallas as pl
from jax.experimental.pallas import tpu as pltpu

# Layer sizes from the PyTorch module.
LAYER_DIMS = [2, 16, 32, 64, 128, 784]
OUT_DIM = LAYER_DIMS[-1]


def _round_up(x, m):
    return ((x + m - 1) // m) * m


def _device_kind():
    try:
        return jax.devices()[0].device_kind.lower()
    except Exception:
        return ""


def _generator_kernel(x_ref,
                      w1_ref, b1_ref,
                      w2_ref, b2_ref,
                      w3_ref, b3_ref,
                      w4_ref, b4_ref,
                      w5_ref, b5_ref,
                      out_ref):
    # ---- Layer 1: Linear(2,16) + ReLU on the VPU ---------------------------
    # K=2 / N=16 would waste an MXU pass; two broadcast FMAs keep the
    # vector-extended slot free.  Result goes to bf16 for the MXU layers.
    x = x_ref[...]                        # (TB, 2)  f32
    w1 = w1_ref[...]                      # (2, 16)  f32 (VPU path stays f32)
    h = (x[:, 0:1] * w1[0:1, :]
         + x[:, 1:2] * w1[1:2, :]
         + b1_ref[...])
    h = jnp.maximum(h, 0.0).astype(jnp.bfloat16)

    # ---- Layers 2..4 on the MXU: bf16 operands, f32 acc, bf16 activations --
    def dense_relu_bf16(h, w_ref, b_ref):
        y = jnp.dot(h, w_ref[...], preferred_element_type=jnp.float32) + b_ref[...]
        return jnp.maximum(y, 0.0).astype(jnp.bfloat16)

    h = dense_relu_bf16(h, w2_ref, b2_ref)      # (TB, 32)  bf16
    h = dense_relu_bf16(h, w3_ref, b3_ref)      # (TB, 64)  bf16
    h = dense_relu_bf16(h, w4_ref, b4_ref)      # (TB, 128) bf16

    # ---- Layer 5 (no ReLU): bias add in f32, cast straight to out dtype ----
    y = jnp.dot(h, w5_ref[...], preferred_element_type=jnp.float32) + b5_ref[...]
    out_ref[...] = y.astype(out_ref.dtype)


def _select_tile(batch, tb, kind):
    """Generation-aware batch tile selection."""
    if tb is None:
        if "v6" in kind:
            tb = 2048          # fits easily once vmem_limit is raised
        else:
            tb = 1024          # v5e (16 MiB scoped default) / v7x (64 MiB VMEM)
    tb = max(8, _round_up(min(tb, batch), 8))
    # v7x: 2 TensorCores share the "parallel" batch axis -> keep >= 2 grid steps.
    if "v7" in kind and batch > 8 and _round_up(batch, tb) // tb < 2:
        tb = max(8, _round_up((batch + 1) // 2, 8))
    padded = _round_up(batch, tb)
    return tb, padded


def _vmem_limit_bytes(kind):
    if "v6" in kind:
        return 64 << 20        # 128 MiB physical; plenty of headroom at tb=2048
    if "v5" in kind:
        return 32 << 20        # default scoped limit is only 16 MiB on v5e
    return 48 << 20            # v7x (64 MiB physical per TC) / unknown: headroom


def generator_forward(x, params, *, tb=None, out_dtype=jnp.bfloat16):
    """Generator MLP forward.

    x: (batch, 2) float32.
    params: list of (W (in, out) f32, b (1, out) f32) -- PyTorch weights transposed.
    tb: batch tile (default is generation-aware); rounded to a multiple of 8.
        Batch is padded to a multiple of the tile and the padding sliced away.
    out_dtype: bf16 by default (the kernel is HBM-write-bound on the 784-wide
        output; bf16 halves the dominant store traffic).  Pass jnp.float32 for
        a bit-closer match to the PyTorch f32 output (MXU layers still use
        bf16 operands with f32 accumulation -> ~5e-2 error vs pure-f32 math).
    """
    batch = x.shape[0]
    kind = _device_kind()

    tb, padded = _select_tile(batch, tb, kind)
    if padded != batch:
        x = jnp.pad(x, ((0, padded - batch), (0, 0)))
    grid = (padded // tb,)

    # bf16 weights for the MXU layers; layer-1 weight (2x16) stays f32 for the
    # VPU path; biases stay f32 (added after the f32-accumulated matmul).
    flat_args = [x]
    weight_bytes = 0
    for li, (w, b) in enumerate(params):
        w_k = w if li == 0 else w.astype(jnp.bfloat16)
        flat_args.extend([w_k, b])
        weight_bytes += w.size * (4 if li == 0 else 2) + b.size * 4

    out_itemsize = jnp.dtype(out_dtype).itemsize
    flops = 2 * padded * sum(LAYER_DIMS[i] * LAYER_DIMS[i + 1]
                             for i in range(len(LAYER_DIMS) - 1))
    bytes_accessed = (padded * (LAYER_DIMS[0] * 4 + OUT_DIM * out_itemsize)
                      + weight_bytes)
    cost = pl.CostEstimate(flops=flops, transcendentals=0,
                           bytes_accessed=bytes_accessed)

    compiler_params = pltpu.CompilerParams(
        dimension_semantics=("parallel",),           # shard batch tiles across TCs
        vmem_limit_bytes=_vmem_limit_bytes(kind),
    )

    def _run(single_buffer_weights):
        in_specs = [pl.BlockSpec((tb, LAYER_DIMS[0]), lambda i: (i, 0))]
        for (w, b) in params:
            if single_buffer_weights:
                # Resident blocks (constant index_map) never get re-fetched;
                # a single buffer frees ~0.25 MiB of VMEM headroom.
                in_specs.append(pl.BlockSpec(w.shape, lambda i: (0, 0),
                                             pipeline_mode=pl.Buffered(1)))
                in_specs.append(pl.BlockSpec(b.shape, lambda i: (0, 0),
                                             pipeline_mode=pl.Buffered(1)))
            else:
                in_specs.append(pl.BlockSpec(w.shape, lambda i: (0, 0)))
                in_specs.append(pl.BlockSpec(b.shape, lambda i: (0, 0)))

        return pl.pallas_call(
            _generator_kernel,
            out_shape=jax.ShapeDtypeStruct((padded, OUT_DIM), out_dtype),
            grid=grid,
            in_specs=in_specs,
            # Lane-dense output: tile only the batch (sublane) axis; keep all
            # 784 features as the last dim so stores stay (mostly) unmasked.
            out_specs=pl.BlockSpec((tb, OUT_DIM), lambda i: (i, 0)),
            compiler_params=compiler_params,
            cost_estimate=cost,
        )(*flat_args)

    try:
        out = _run(True)
    except Exception:
        # Fallback for JAX versions that reject single-buffered pipeline_mode.
        out = _run(False)

    return out[:batch] if padded != batch else out


def init_params(key):
    """Deterministic parameter init (PyTorch-style uniform(-1/sqrt(fan_in), +))."""
    params = []
    for i in range(len(LAYER_DIMS) - 1):
        fan_in, fan_out = LAYER_DIMS[i], LAYER_DIMS[i + 1]
        key, kw, kb = jax.random.split(key, 3)
        bound = 1.0 / jnp.sqrt(fan_in)
        # stored transposed: (in, out) so the kernel does x @ W
        w_t = jax.random.uniform(kw, (fan_in, fan_out), jnp.float32, -bound, bound)
        b = jax.random.uniform(kb, (1, fan_out), jnp.float32, -bound, bound)
        params.append((w_t, b))
    return params


def reference_forward_f32(x, params):
    """Pure f32 reference (PyTorch-equivalent math)."""
    h = x
    for i, (w, b) in enumerate(params):
        h = jnp.dot(h, w, precision=jax.lax.Precision.HIGHEST) + b
        if i < len(params) - 1:
            h = jnp.maximum(h, 0.0)
    return h


def reference_forward_kernel_dtypes(x, params, out_dtype=jnp.bfloat16):
    """Mirrors the kernel's dtype path exactly:
    layer-1 f32 VPU -> bf16 activations, layers 2-5 bf16-in / f32-acc,
    final cast to out_dtype."""
    w1, b1 = params[0]
    h = x[:, 0:1] * w1[0:1, :] + x[:, 1:2] * w1[1:2, :] + b1
    h = jnp.maximum(h, 0.0).astype(jnp.bfloat16)
    for (w, b) in params[1:-1]:
        h = jnp.dot(h, w.astype(jnp.bfloat16),
                    preferred_element_type=jnp.float32) + b
        h = jnp.maximum(h, 0.0).astype(jnp.bfloat16)
    w, b = params[-1]
    y = jnp.dot(h, w.astype(jnp.bfloat16),
                preferred_element_type=jnp.float32) + b
    return y.astype(out_dtype)


if __name__ == "__main__":
    key = jax.random.PRNGKey(0)
    k_x, k_p = jax.random.split(key)

    batch = 20          # not a multiple of the tile -> exercises padding
    tb = 8              # small tile so the grid (3 steps) is actually exercised
    x = jax.random.normal(k_x, (batch, LAYER_DIMS[0]), dtype=jnp.float32)
    params = init_params(k_p)

    # --- Default path: bf16 output (the recommended, HBM-traffic-halving mode)
    out_bf16 = generator_forward(x, params, tb=tb)           # default out_dtype=bf16
    out_bf16 = jax.block_until_ready(out_bf16)
    assert out_bf16.shape == (batch, OUT_DIM), out_bf16.shape
    assert out_bf16.dtype == jnp.bfloat16, out_bf16.dtype

    ref_bf16 = reference_forward_kernel_dtypes(x, params, out_dtype=jnp.bfloat16)
    diff_bf16 = float(jnp.max(jnp.abs(out_bf16.astype(jnp.float32)
                                      - ref_bf16.astype(jnp.float32))))
    assert diff_bf16 < 2.5e-2, f"bf16-path mismatch: max abs diff = {diff_bf16}"

    # --- f32-output path: tight check vs the dtype-mirrored reference --------
    out_f32 = generator_forward(x, params, tb=tb, out_dtype=jnp.float32)
    out_f32 = jax.block_until_ready(out_f32)
    assert out_f32.shape == (batch, OUT_DIM) and out_f32.dtype == jnp.float32

    ref_mirror = reference_forward_kernel_dtypes(x, params, out_dtype=jnp.float32)
    assert jnp.allclose(out_f32, ref_mirror, atol=5e-3, rtol=5e-3), (
        "mismatch vs dtype-mirrored reference: max abs diff = "
        f"{float(jnp.max(jnp.abs(out_f32 - ref_mirror)))}")

    # --- Loose sanity check vs the pure-f32 PyTorch-equivalent forward -------
    # (bf16 matmul operands bound the error, f32 accumulation keeps it small).
    ref_f32 = reference_forward_f32(x, params)
    assert jnp.allclose(out_f32, ref_f32, atol=7.5e-2, rtol=7.5e-2), (
        "mismatch vs f32 reference: max abs diff = "
        f"{float(jnp.max(jnp.abs(out_f32 - ref_f32)))}")

    print("KERNEL_OK")
</pallas_src>

<mosaic_0001>
module attributes {stable_mosaic.version = 11 : i64} {
  func.func @_generator_kernel(%arg0: i32, %arg1: memref<8x2xf32, #tpu.memory_space<vmem>>, %arg2: memref<2x16xf32, #tpu.memory_space<vmem>>, %arg3: memref<1x16xf32, #tpu.memory_space<vmem>>, %arg4: memref<16x32xbf16, #tpu.memory_space<vmem>>, %arg5: memref<1x32xf32, #tpu.memory_space<vmem>>, %arg6: memref<32x64xbf16, #tpu.memory_space<vmem>>, %arg7: memref<1x64xf32, #tpu.memory_space<vmem>>, %arg8: memref<64x128xbf16, #tpu.memory_space<vmem>>, %arg9: memref<1x128xf32, #tpu.memory_space<vmem>>, %arg10: memref<128x784xbf16, #tpu.memory_space<vmem>>, %arg11: memref<1x784xf32, #tpu.memory_space<vmem>>, %arg12: memref<8x784xbf16, #tpu.memory_space<vmem>>) attributes {dimension_semantics = [#tpu.dimension_semantics<parallel>], iteration_bounds = array<i64: 3>, scalar_prefetch = 0 : i64, scratch_operands = 0 : i64, tpu.core_type = #tpu.core_type<tc>, window_params = [{transform_indices = @transform_0, window_bounds = array<i64: 8, 2>}, {pipeline_mode = #tpu.pipeline_mode<synchronous>, transform_indices = @transform_1, window_bounds = array<i64: 2, 16>}, {pipeline_mode = #tpu.pipeline_mode<synchronous>, transform_indices = @transform_2, window_bounds = array<i64: 1, 16>}, {pipeline_mode = #tpu.pipeline_mode<synchronous>, transform_indices = @transform_3, window_bounds = array<i64: 16, 32>}, {pipeline_mode = #tpu.pipeline_mode<synchronous>, transform_indices = @transform_4, window_bounds = array<i64: 1, 32>}, {pipeline_mode = #tpu.pipeline_mode<synchronous>, transform_indices = @transform_5, window_bounds = array<i64: 32, 64>}, {pipeline_mode = #tpu.pipeline_mode<synchronous>, transform_indices = @transform_6, window_bounds = array<i64: 1, 64>}, {pipeline_mode = #tpu.pipeline_mode<synchronous>, transform_indices = @transform_7, window_bounds = array<i64: 64, 128>}, {pipeline_mode = #tpu.pipeline_mode<synchronous>, transform_indices = @transform_8, window_bounds = array<i64: 1, 128>}, {pipeline_mode = #tpu.pipeline_mode<synchronous>, transform_indices = @transform_9, window_bounds = array<i64: 128, 784>}, {pipeline_mode = #tpu.pipeline_mode<synchronous>, transform_indices = @transform_10, window_bounds = array<i64: 1, 784>}, {transform_indices = @transform_11, window_bounds = array<i64: 8, 784>}]} {
    %c0 = arith.constant 0 : index
    %c0_0 = arith.constant 0 : index
    %0 = vector.load %arg1[%c0, %c0_0] : memref<8x2xf32, #tpu.memory_space<vmem>>, vector<8x2xf32>
    %c0_1 = arith.constant 0 : index
    %c0_2 = arith.constant 0 : index
    %1 = vector.load %arg2[%c0_1, %c0_2] : memref<2x16xf32, #tpu.memory_space<vmem>>, vector<2x16xf32>
    %2 = vector.extract_strided_slice %0 {offsets = [0, 0], sizes = [8, 1], strides = [1, 1]} : vector<8x2xf32> to vector<8x1xf32>
    %3 = vector.extract_strided_slice %1 {offsets = [0, 0], sizes = [1, 16], strides = [1, 1]} : vector<2x16xf32> to vector<1x16xf32>
    %4 = vector.broadcast %2 : vector<8x1xf32> to vector<8x16xf32>
    %5 = vector.broadcast %3 : vector<1x16xf32> to vector<8x16xf32>
    %6 = arith.mulf %4, %5 : vector<8x16xf32>
    %7 = vector.extract_strided_slice %0 {offsets = [0, 1], sizes = [8, 1], strides = [1, 1]} : vector<8x2xf32> to vector<8x1xf32>
    %8 = vector.extract_strided_slice %1 {offsets = [1, 0], sizes = [1, 16], strides = [1, 1]} : vector<2x16xf32> to vector<1x16xf32>
    %9 = vector.broadcast %7 : vector<8x1xf32> to vector<8x16xf32>
    %10 = vector.broadcast %8 : vector<1x16xf32> to vector<8x16xf32>
    %11 = arith.mulf %9, %10 : vector<8x16xf32>
    %12 = arith.addf %6, %11 : vector<8x16xf32>
    %c0_3 = arith.constant 0 : index
    %c0_4 = arith.constant 0 : index
    %13 = vector.load %arg3[%c0_3, %c0_4] : memref<1x16xf32, #tpu.memory_space<vmem>>, vector<1x16xf32>
    %14 = vector.broadcast %13 : vector<1x16xf32> to vector<8x16xf32>
    %15 = arith.addf %12, %14 : vector<8x16xf32>
    %cst = arith.constant 0.000000e+00 : f32
    %16 = vector.broadcast %cst : f32 to vector<8x16xf32>
    %17 = arith.maximumf %15, %16 : vector<8x16xf32>
    %18 = arith.truncf %17 : vector<8x16xf32> to vector<8x16xbf16>
    %c0_5 = arith.constant 0 : index
    %c0_6 = arith.constant 0 : index
    %19 = vector.load %arg4[%c0_5, %c0_6] : memref<16x32xbf16, #tpu.memory_space<vmem>>, vector<16x32xbf16>
    %cst_7 = arith.constant dense<0.000000e+00> : vector<8x32xf32>
    %20 = tpu.matmul %18, %19, %cst_7 {dimension_numbers = #tpu.dot_dimension_numbers<[1], [0], [0], [1], [0, 0, 1, 1], [], []>} : vector<8x16xbf16>, vector<16x32xbf16>, vector<8x32xf32> -> vector<8x32xf32>
    %c0_8 = arith.constant 0 : index
    %c0_9 = arith.constant 0 : index
    %21 = vector.load %arg5[%c0_8, %c0_9] : memref<1x32xf32, #tpu.memory_space<vmem>>, vector<1x32xf32>
    %22 = vector.broadcast %21 : vector<1x32xf32> to vector<8x32xf32>
    %23 = arith.addf %20, %22 : vector<8x32xf32>
    %cst_10 = arith.constant 0.000000e+00 : f32
    %24 = vector.broadcast %cst_10 : f32 to vector<8x32xf32>
    %25 = arith.maximumf %23, %24 : vector<8x32xf32>
    %26 = arith.truncf %25 : vector<8x32xf32> to vector<8x32xbf16>
    %c0_11 = arith.constant 0 : index
    %c0_12 = arith.constant 0 : index
    %27 = vector.load %arg6[%c0_11, %c0_12] : memref<32x64xbf16, #tpu.memory_space<vmem>>, vector<32x64xbf16>
    %cst_13 = arith.constant dense<0.000000e+00> : vector<8x64xf32>
    %28 = tpu.matmul %26, %27, %cst_13 {dimension_numbers = #tpu.dot_dimension_numbers<[1], [0], [0], [1], [0, 0, 1, 1], [], []>} : vector<8x32xbf16>, vector<32x64xbf16>, vector<8x64xf32> -> vector<8x64xf32>
    %c0_14 = arith.constant 0 : index
    %c0_15 = arith.constant 0 : index
    %29 = vector.load %arg7[%c0_14, %c0_15] : memref<1x64xf32, #tpu.memory_space<vmem>>, vector<1x64xf32>
    %30 = vector.broadcast %29 : vector<1x64xf32> to vector<8x64xf32>
    %31 = arith.addf %28, %30 : vector<8x64xf32>
    %cst_16 = arith.constant 0.000000e+00 : f32
    %32 = vector.broadcast %cst_16 : f32 to vector<8x64xf32>
    %33 = arith.maximumf %31, %32 : vector<8x64xf32>
    %34 = arith.truncf %33 : vector<8x64xf32> to vector<8x64xbf16>
    %c0_17 = arith.constant 0 : index
    %c0_18 = arith.constant 0 : index
    %35 = vector.load %arg8[%c0_17, %c0_18] : memref<64x128xbf16, #tpu.memory_space<vmem>>, vector<64x128xbf16>
    %cst_19 = arith.constant dense<0.000000e+00> : vector<8x128xf32>
    %36 = tpu.matmul %34, %35, %cst_19 {dimension_numbers = #tpu.dot_dimension_numbers<[1], [0], [0], [1], [0, 0, 1, 1], [], []>} : vector<8x64xbf16>, vector<64x128xbf16>, vector<8x128xf32> -> vector<8x128xf32>
    %c0_20 = arith.constant 0 : index
    %c0_21 = arith.constant 0 : index
    %37 = vector.load %arg9[%c0_20, %c0_21] : memref<1x128xf32, #tpu.memory_space<vmem>>, vector<1x128xf32>
    %38 = vector.broadcast %37 : vector<1x128xf32> to vector<8x128xf32>
    %39 = arith.addf %36, %38 : vector<8x128xf32>
    %cst_22 = arith.constant 0.000000e+00 : f32
    %40 = vector.broadcast %cst_22 : f32 to vector<8x128xf32>
    %41 = arith.maximumf %39, %40 : vector<8x128xf32>
    %42 = arith.truncf %41 : vector<8x128xf32> to vector<8x128xbf16>
    %c0_23 = arith.constant 0 : index
    %c0_24 = arith.constant 0 : index
    %43 = vector.load %arg10[%c0_23, %c0_24] : memref<128x784xbf16, #tpu.memory_space<vmem>>, vector<128x784xbf16>
    %cst_25 = arith.constant dense<0.000000e+00> : vector<8x784xf32>
    %44 = tpu.matmul %42, %43, %cst_25 {dimension_numbers = #tpu.dot_dimension_numbers<[1], [0], [0], [1], [0, 0, 1, 1], [], []>} : vector<8x128xbf16>, vector<128x784xbf16>, vector<8x784xf32> -> vector<8x784xf32>
    %c0_26 = arith.constant 0 : index
    %c0_27 = arith.constant 0 : index
    %45 = vector.load %arg11[%c0_26, %c0_27] : memref<1x784xf32, #tpu.memory_space<vmem>>, vector<1x784xf32>
    %46 = vector.broadcast %45 : vector<1x784xf32> to vector<8x784xf32>
    %47 = arith.addf %44, %46 : vector<8x784xf32>
    %48 = arith.truncf %47 : vector<8x784xf32> to vector<8x784xbf16>
    %c0_28 = arith.constant 0 : index
    %c0_29 = arith.constant 0 : index
    %49 = vector.load %arg12[%c0_28, %c0_29] : memref<8x784xbf16, #tpu.memory_space<vmem>>, vector<8x784xbf16>
    tpu.vector_store %arg12[%c0_28, %c0_29], %48 {strides = array<i32>} : memref<8x784xbf16, #tpu.memory_space<vmem>>, vector<8x784xbf16>,
    return
  }
  func.func @transform_0(%arg0: i32) -> (i32, i32) {
    %c0_i32 = arith.constant 0 : i32
    %c0_i32_0 = arith.constant 0 : i32
    return %arg0, %c0_i32 : i32, i32
  }
  func.func @transform_1(%arg0: i32) -> (i32, i32) {
    %c0_i32 = arith.constant 0 : i32
    %c0_i32_0 = arith.constant 0 : i32
    %c0_i32_1 = arith.constant 0 : i32
    return %c0_i32, %c0_i32_0 : i32, i32
  }
  func.func @transform_2(%arg0: i32) -> (i32, i32) {
    %c0_i32 = arith.constant 0 : i32
    %c0_i32_0 = arith.constant 0 : i32
    %c0_i32_1 = arith.constant 0 : i32
    return %c0_i32, %c0_i32_0 : i32, i32
  }
  func.func @transform_3(%arg0: i32) -> (i32, i32) {
    %c0_i32 = arith.constant 0 : i32
    %c0_i32_0 = arith.constant 0 : i32
    %c0_i32_1 = arith.constant 0 : i32
    return %c0_i32, %c0_i32_0 : i32, i32
  }
  func.func @transform_4(%arg0: i32) -> (i32, i32) {
    %c0_i32 = arith.constant 0 : i32
    %c0_i32_0 = arith.constant 0 : i32
    %c0_i32_1 = arith.constant 0 : i32
    return %c0_i32, %c0_i32_0 : i32, i32
  }
  func.func @transform_5(%arg0: i32) -> (i32, i32) {
    %c0_i32 = arith.constant 0 : i32
    %c0_i32_0 = arith.constant 0 : i32
    %c0_i32_1 = arith.constant 0 : i32
    return %c0_i32, %c0_i32_0 : i32, i32
  }
  func.func @transform_6(%arg0: i32) -> (i32, i32) {
    %c0_i32 = arith.constant 0 : i32
    %c0_i32_0 = arith.constant 0 : i32
    %c0_i32_1 = arith.constant 0 : i32
    return %c0_i32, %c0_i32_0 : i32, i32
  }
  func.func @transform_7(%arg0: i32) -> (i32, i32) {
    %c0_i32 = arith.constant 0 : i32
    %c0_i32_0 = arith.constant 0 : i32
    %c0_i32_1 = arith.constant 0 : i32
    return %c0_i32, %c0_i32_0 : i32, i32
  }
  func.func @transform_8(%arg0: i32) -> (i32, i32) {
    %c0_i32 = arith.constant 0 : i32
    %c0_i32_0 = arith.constant 0 : i32
    %c0_i32_1 = arith.constant 0 : i32
    return %c0_i32, %c0_i32_0 : i32, i32
  }
  func.func @transform_9(%arg0: i32) -> (i32, i32) {
    %c0_i32 = arith.constant 0 : i32
    %c0_i32_0 = arith.constant 0 : i32
    %c0_i32_1 = arith.constant 0 : i32
    return %c0_i32, %c0_i32_0 : i32, i32
  }
  func.func @transform_10(%arg0: i32) -> (i32, i32) {
    %c0_i32 = arith.constant 0 : i32
    %c0_i32_0 = arith.constant 0 : i32
    %c0_i32_1 = arith.constant 0 : i32
    return %c0_i32, %c0_i32_0 : i32, i32
  }
  func.func @transform_11(%arg0: i32) -> (i32, i32) {
    %c0_i32 = arith.constant 0 : i32
    %c0_i32_0 = arith.constant 0 : i32
    return %arg0, %c0_i32 : i32, i32
  }
}

module attributes {stable_mosaic.version = 11 : i64} {
  func.func @_generator_kernel(%arg0: i32, %arg1: memref<8x2xf32, #tpu.memory_space<vmem>>, %arg2: memref<2x16xf32, #tpu.memory_space<vmem>>, %arg3: memref<1x16xf32, #tpu.memory_space<vmem>>, %arg4: memref<16x32xbf16, #tpu.memory_space<vmem>>, %arg5: memref<1x32xf32, #tpu.memory_space<vmem>>, %arg6: memref<32x64xbf16, #tpu.memory_space<vmem>>, %arg7: memref<1x64xf32, #tpu.memory_space<vmem>>, %arg8: memref<64x128xbf16, #tpu.memory_space<vmem>>, %arg9: memref<1x128xf32, #tpu.memory_space<vmem>>, %arg10: memref<128x784xbf16, #tpu.memory_space<vmem>>, %arg11: memref<1x784xf32, #tpu.memory_space<vmem>>, %arg12: memref<8x784xbf16, #tpu.memory_space<vmem>>) attributes {dimension_semantics = [#tpu.dimension_semantics<parallel>], iteration_bounds = array<i64: 3>, scalar_prefetch = 0 : i64, scratch_operands = 0 : i64, tpu.core_type = #tpu.core_type<tc>, window_params = [{transform_indices = @transform_0, window_bounds = array<i64: 8, 2>}, {pipeline_mode = #tpu.pipeline_mode<synchronous>, transform_indices = @transform_1, window_bounds = array<i64: 2, 16>}, {pipeline_mode = #tpu.pipeline_mode<synchronous>, transform_indices = @transform_2, window_bounds = array<i64: 1, 16>}, {pipeline_mode = #tpu.pipeline_mode<synchronous>, transform_indices = @transform_3, window_bounds = array<i64: 16, 32>}, {pipeline_mode = #tpu.pipeline_mode<synchronous>, transform_indices = @transform_4, window_bounds = array<i64: 1, 32>}, {pipeline_mode = #tpu.pipeline_mode<synchronous>, transform_indices = @transform_5, window_bounds = array<i64: 32, 64>}, {pipeline_mode = #tpu.pipeline_mode<synchronous>, transform_indices = @transform_6, window_bounds = array<i64: 1, 64>}, {pipeline_mode = #tpu.pipeline_mode<synchronous>, transform_indices = @transform_7, window_bounds = array<i64: 64, 128>}, {pipeline_mode = #tpu.pipeline_mode<synchronous>, transform_indices = @transform_8, window_bounds = array<i64: 1, 128>}, {pipeline_mode = #tpu.pipeline_mode<synchronous>, transform_indices = @transform_9, window_bounds = array<i64: 128, 784>}, {pipeline_mode = #tpu.pipeline_mode<synchronous>, transform_indices = @transform_10, window_bounds = array<i64: 1, 784>}, {transform_indices = @transform_11, window_bounds = array<i64: 8, 784>}]} {
    %c0 = arith.constant 0 : index
    %c0_0 = arith.constant 0 : index
    %0 = vector.load %arg1[%c0, %c0_0] : memref<8x2xf32, #tpu.memory_space<vmem>>, vector<8x2xf32>
    %c0_1 = arith.constant 0 : index
    %c0_2 = arith.constant 0 : index
    %1 = vector.load %arg2[%c0_1, %c0_2] : memref<2x16xf32, #tpu.memory_space<vmem>>, vector<2x16xf32>
    %2 = vector.extract_strided_slice %0 {offsets = [0, 0], sizes = [8, 1], strides = [1, 1]} : vector<8x2xf32> to vector<8x1xf32>
    %3 = vector.extract_strided_slice %1 {offsets = [0, 0], sizes = [1, 16], strides = [1, 1]} : vector<2x16xf32> to vector<1x16xf32>
    %4 = vector.broadcast %2 : vector<8x1xf32> to vector<8x16xf32>
    %5 = vector.broadcast %3 : vector<1x16xf32> to vector<8x16xf32>
    %6 = arith.mulf %4, %5 : vector<8x16xf32>
    %7 = vector.extract_strided_slice %0 {offsets = [0, 1], sizes = [8, 1], strides = [1, 1]} : vector<8x2xf32> to vector<8x1xf32>
    %8 = vector.extract_strided_slice %1 {offsets = [1, 0], sizes = [1, 16], strides = [1, 1]} : vector<2x16xf32> to vector<1x16xf32>
    %9 = vector.broadcast %7 : vector<8x1xf32> to vector<8x16xf32>
    %10 = vector.broadcast %8 : vector<1x16xf32> to vector<8x16xf32>
    %11 = arith.mulf %9, %10 : vector<8x16xf32>
    %12 = arith.addf %6, %11 : vector<8x16xf32>
    %c0_3 = arith.constant 0 : index
    %c0_4 = arith.constant 0 : index
    %13 = vector.load %arg3[%c0_3, %c0_4] : memref<1x16xf32, #tpu.memory_space<vmem>>, vector<1x16xf32>
    %14 = vector.broadcast %13 : vector<1x16xf32> to vector<8x16xf32>
    %15 = arith.addf %12, %14 : vector<8x16xf32>
    %cst = arith.constant 0.000000e+00 : f32
    %16 = vector.broadcast %cst : f32 to vector<8x16xf32>
    %17 = arith.maximumf %15, %16 : vector<8x16xf32>
    %18 = arith.truncf %17 : vector<8x16xf32> to vector<8x16xbf16>
    %c0_5 = arith.constant 0 : index
    %c0_6 = arith.constant 0 : index
    %19 = vector.load %arg4[%c0_5, %c0_6] : memref<16x32xbf16, #tpu.memory_space<vmem>>, vector<16x32xbf16>
    %cst_7 = arith.constant dense<0.000000e+00> : vector<8x32xf32>
    %20 = tpu.matmul %18, %19, %cst_7 {dimension_numbers = #tpu.dot_dimension_numbers<[1], [0], [0], [1], [0, 0, 1, 1], [], []>} : vector<8x16xbf16>, vector<16x32xbf16>, vector<8x32xf32> -> vector<8x32xf32>
    %c0_8 = arith.constant 0 : index
    %c0_9 = arith.constant 0 : index
    %21 = vector.load %arg5[%c0_8, %c0_9] : memref<1x32xf32, #tpu.memory_space<vmem>>, vector<1x32xf32>
    %22 = vector.broadcast %21 : vector<1x32xf32> to vector<8x32xf32>
    %23 = arith.addf %20, %22 : vector<8x32xf32>
    %cst_10 = arith.constant 0.000000e+00 : f32
    %24 = vector.broadcast %cst_10 : f32 to vector<8x32xf32>
    %25 = arith.maximumf %23, %24 : vector<8x32xf32>
    %26 = arith.truncf %25 : vector<8x32xf32> to vector<8x32xbf16>
    %c0_11 = arith.constant 0 : index
    %c0_12 = arith.constant 0 : index
    %27 = vector.load %arg6[%c0_11, %c0_12] : memref<32x64xbf16, #tpu.memory_space<vmem>>, vector<32x64xbf16>
    %cst_13 = arith.constant dense<0.000000e+00> : vector<8x64xf32>
    %28 = tpu.matmul %26, %27, %cst_13 {dimension_numbers = #tpu.dot_dimension_numbers<[1], [0], [0], [1], [0, 0, 1, 1], [], []>} : vector<8x32xbf16>, vector<32x64xbf16>, vector<8x64xf32> -> vector<8x64xf32>
    %c0_14 = arith.constant 0 : index
    %c0_15 = arith.constant 0 : index
    %29 = vector.load %arg7[%c0_14, %c0_15] : memref<1x64xf32, #tpu.memory_space<vmem>>, vector<1x64xf32>
    %30 = vector.broadcast %29 : vector<1x64xf32> to vector<8x64xf32>
    %31 = arith.addf %28, %30 : vector<8x64xf32>
    %cst_16 = arith.constant 0.000000e+00 : f32
    %32 = vector.broadcast %cst_16 : f32 to vector<8x64xf32>
    %33 = arith.maximumf %31, %32 : vector<8x64xf32>
    %34 = arith.truncf %33 : vector<8x64xf32> to vector<8x64xbf16>
    %c0_17 = arith.constant 0 : index
    %c0_18 = arith.constant 0 : index
    %35 = vector.load %arg8[%c0_17, %c0_18] : memref<64x128xbf16, #tpu.memory_space<vmem>>, vector<64x128xbf16>
    %cst_19 = arith.constant dense<0.000000e+00> : vector<8x128xf32>
    %36 = tpu.matmul %34, %35, %cst_19 {dimension_numbers = #tpu.dot_dimension_numbers<[1], [0], [0], [1], [0, 0, 1, 1], [], []>} : vector<8x64xbf16>, vector<64x128xbf16>, vector<8x128xf32> -> vector<8x128xf32>
    %c0_20 = arith.constant 0 : index
    %c0_21 = arith.constant 0 : index
    %37 = vector.load %arg9[%c0_20, %c0_21] : memref<1x128xf32, #tpu.memory_space<vmem>>, vector<1x128xf32>
    %38 = vector.broadcast %37 : vector<1x128xf32> to vector<8x128xf32>
    %39 = arith.addf %36, %38 : vector<8x128xf32>
    %cst_22 = arith.constant 0.000000e+00 : f32
    %40 = vector.broadcast %cst_22 : f32 to vector<8x128xf32>
    %41 = arith.maximumf %39, %40 : vector<8x128xf32>
    %42 = arith.truncf %41 : vector<8x128xf32> to vector<8x128xbf16>
    %c0_23 = arith.constant 0 : index
    %c0_24 = arith.constant 0 : index
    %43 = vector.load %arg10[%c0_23, %c0_24] : memref<128x784xbf16, #tpu.memory_space<vmem>>, vector<128x784xbf16>
    %cst_25 = arith.constant dense<0.000000e+00> : vector<8x784xf32>
    %44 = tpu.matmul %42, %43, %cst_25 {dimension_numbers = #tpu.dot_dimension_numbers<[1], [0], [0], [1], [0, 0, 1, 1], [], []>} : vector<8x128xbf16>, vector<128x784xbf16>, vector<8x784xf32> -> vector<8x784xf32>
    %c0_26 = arith.constant 0 : index
    %c0_27 = arith.constant 0 : index
    %45 = vector.load %arg11[%c0_26, %c0_27] : memref<1x784xf32, #tpu.memory_space<vmem>>, vector<1x784xf32>
    %46 = vector.broadcast %45 : vector<1x784xf32> to vector<8x784xf32>
    %47 = arith.addf %44, %46 : vector<8x784xf32>
    %48 = arith.truncf %47 : vector<8x784xf32> to vector<8x784xbf16>
    %c0_28 = arith.constant 0 : index
    %c0_29 = arith.constant 0 : index
    %49 = vector.load %arg12[%c0_28, %c0_29] : memref<8x784xbf16, #tpu.memory_space<vmem>>, vector<8x784xbf16>
    tpu.vector_store %arg12[%c0_28, %c0_29], %48 {strides = array<i32>} : memref<8x784xbf16, #tpu.memory_space<vmem>>, vector<8x784xbf16>,
    return
  }
  func.func @transform_0(%arg0: i32) -> (i32, i32) {
    %c0_i32 = arith.constant 0 : i32
    %c0_i32_0 = arith.constant 0 : i32
    return %arg0, %c0_i32 : i32, i32
  }
  func.func @transform_1(%arg0: i32) -> (i32, i32) {
    %c0_i32 = arith.constant 0 : i32
    %c0_i32_0 = arith.constant 0 : i32
    %c0_i32_1 = arith.constant 0 : i32
    return %c0_i32, %c0_i32_0 : i32, i32
  }
  func.func @transform_2(%arg0: i32) -> (i32, i32) {
    %c0_i32 = arith.constant 0 : i32
    %c0_i32_0 = arith.constant 0 : i32
    %c0_i32_1 = arith.constant 0 : i32
    return %c0_i32, %c0_i32_0 : i32, i32
  }
  func.func @transform_3(%arg0: i32) -> (i32, i32) {
    %c0_i32 = arith.constant 0 : i32
    %c0_i32_0 = arith.constant 0 : i32
    %c0_i32_1 = arith.constant 0 : i32
    return %c0_i32, %c0_i32_0 : i32, i32
  }
  func.func @transform_4(%arg0: i32) -> (i32, i32) {
    %c0_i32 = arith.constant 0 : i32
    %c0_i32_0 = arith.constant 0 : i32
    %c0_i32_1 = arith.constant 0 : i32
    return %c0_i32, %c0_i32_0 : i32, i32
  }
  func.func @transform_5(%arg0: i32) -> (i32, i32) {
    %c0_i32 = arith.constant 0 : i32
    %c0_i32_0 = arith.constant 0 : i32
    %c0_i32_1 = arith.constant 0 : i32
    return %c0_i32, %c0_i32_0 : i32, i32
  }
  func.func @transform_6(%arg0: i32) -> (i32, i32) {
    %c0_i32 = arith.constant 0 : i32
    %c0_i32_0 = arith.constant 0 : i32
    %c0_i32_1 = arith.constant 0 : i32
    return %c0_i32, %c0_i32_0 : i32, i32
  }
  func.func @transform_7(%arg0: i32) -> (i32, i32) {
    %c0_i32 = arith.constant 0 : i32
    %c0_i32_0 = arith.constant 0 : i32
    %c0_i32_1 = arith.constant 0 : i32
    return %c0_i32, %c0_i32_0 : i32, i32
  }
  func.func @transform_8(%arg0: i32) -> (i32, i32) {
    %c0_i32 = arith.constant 0 : i32
    %c0_i32_0 = arith.constant 0 : i32
    %c0_i32_1 = arith.constant 0 : i32
    return %c0_i32, %c0_i32_0 : i32, i32
  }
  func.func @transform_9(%arg0: i32) -> (i32, i32) {
    %c0_i32 = arith.constant 0 : i32
    %c0_i32_0 = arith.constant 0 : i32
    %c0_i32_1 = arith.constant 0 : i32
    return %c0_i32, %c0_i32_0 : i32, i32
  }
  func.func @transform_10(%arg0: i32) -> (i32, i32) {
    %c0_i32 = arith.constant 0 : i32
    %c0_i32_0 = arith.constant 0 : i32
    %c0_i32_1 = arith.constant 0 : i32
    return %c0_i32, %c0_i32_0 : i32, i32
  }
  func.func @transform_11(%arg0: i32) -> (i32, i32) {
    %c0_i32 = arith.constant 0 : i32
    %c0_i32_0 = arith.constant 0 : i32
    return %arg0, %c0_i32 : i32, i32
  }
}

</mosaic_0001>

<llo_original>
// kernel: tpu_custom_call.1
$region0: #{tpu_custom_call.1}
  #allocation0 [shape = 'u32[]', space=smem, size = 0x4, offset = 0x4, fixed_abs, tag = 'smem constant byte address 0x4 - core index']
  #allocation1 [shape = 'u32[72,128]{1,0:T(1,128)}', space=vmem, size = 0x9000, scoped, tag = 'internal scratch']
  %s0 = inlined_call_operand.vmem [shape: f32[24,2], index: 0, kind: input, shape index: {}]
  %s1 = inlined_call_operand.vmem [shape: f32[2,16], index: 1, kind: input, shape index: {}]
  %s2 = inlined_call_operand.vmem [shape: f32[1,16], index: 2, kind: input, shape index: {}]
  %s3 = inlined_call_operand.vmem [shape: bf16[16,32], index: 3, kind: input, shape index: {}]
  %s4 = inlined_call_operand.vmem [shape: f32[1,32], index: 4, kind: input, shape index: {}]
  %s5 = inlined_call_operand.vmem [shape: bf16[32,64], index: 5, kind: input, shape index: {}]
  %s6 = inlined_call_operand.vmem [shape: f32[1,64], index: 6, kind: input, shape index: {}]
  %s7 = inlined_call_operand.vmem [shape: bf16[64,128], index: 7, kind: input, shape index: {}]
  %s8 = inlined_call_operand.vmem [shape: f32[1,128], index: 8, kind: input, shape index: {}]
  %s9 = inlined_call_operand.vmem [shape: bf16[128,784], index: 9, kind: input, shape index: {}]
  %s10 = inlined_call_operand.vmem [shape: f32[1,784], index: 10, kind: input, shape index: {}]
  %s11 = inlined_call_operand.hbm [shape: bf16[24,784], index: 11, kind: output, shape index: {}]
  %s12 = sld [smem:[#allocation0]]
  $region77: #{tpu_custom_call.1} parent=0
    _
  %s14 = ssub.s32 1, %s12
  %s15 = scalar_select 0, %s14, %s12
  $region1: #{tpu_custom_call.1} parent=0
    #allocation2 [shape = 'u8[28672]{0}', space=vmem, size = 0x7000, scoped, tag = 'output window, operand 0']
    #allocation3 [shape = 's32[2]{0}', space=sflag, size = 0x8, scoped, tag = 'scoped memory for tpu_custom_call.1']
    %16 = vsyncpa [#allocation3], 0
    %s17 = scalar_lea.sflag [#allocation3], 1
    %18 = vsyncpa %s17, 0
    loop: start=0, step=1, limit=5
    $region2: #{tpu_custom_call.1} parent=1 // loop_pre_header
      _
    $region3: #{tpu_custom_call.1} parent=1 // loop_header
      %s20 = sphi 0, %s24
      %p21 = scmp.ge.s32.totalorder %s20, 5
      %s30 = sphi 0, %s32
      %s33 = sphi 0, %s30
      %s34 = sphi 0, %s33
      %s50 = sphi 0, %s34
      %s54 = sphi 0, %s54
      %s56 = sphi 0, %s54
      %s57 = sphi 0, %s56
      %s71 = sphi 0, %s57
      %s75 = sphi 0, %s75
      %s77 = sphi 0, %s75
      %s78 = sphi 0, %s77
      %s92 = sphi 0, %s78
      %s96 = sphi 0, %s96
      %s98 = sphi 0, %s96
      %s99 = sphi 0, %s98
      %s113 = sphi 0, %s99
      %s117 = sphi 0, %s117
      %s119 = sphi 0, %s117
      %s120 = sphi 0, %s119
      %s134 = sphi 0, %s120
      %s138 = sphi 0, %s138
      %s140 = sphi 0, %s138
      %s141 = sphi 0, %s140
      %s155 = sphi 0, %s141
      %s159 = sphi 0, %s159
      %s161 = sphi 0, %s159
      %s162 = sphi 0, %s161
      %s176 = sphi 0, %s162
      %s180 = sphi 0, %s180
      %s182 = sphi 0, %s180
      %s183 = sphi 0, %s182
      %s197 = sphi 0, %s183
      %s201 = sphi 0, %s201
      %s203 = sphi 0, %s201
      %s204 = sphi 0, %s203
      %s218 = sphi 0, %s204
      %s222 = sphi 0, %s222
      %s224 = sphi 0, %s222
      %s225 = sphi 0, %s224
      %s239 = sphi 0, %s225
      %s243 = sphi 0, %s243
      %s245 = sphi 0, %s243
      %s246 = sphi 0, %s245
      %s260 = sphi 0, %s246
      %s266 = sphi 0, %s268
      %s269 = sphi 0, %s266
      %s270 = sphi 0, %s269
      %s286 = sphi 0, %s270
    $region4: #{tpu_custom_call.1} parent=1 // loop_header_branch
      %23 = sbr.rel (%p21) target = $region8
    $region5: #{tpu_custom_call.1} parent=1 // loop_body
      %s25 = ssub.s32 %s20, 1
      %s26 = ssub.s32 %s20, 2
      %s27 = sadd.s32 %s20, 1
      %s28 = ssub.s32 %s20, %s27
      %p29 = scmp.eq.s32.totalorder %s28, 0
      %s31 = sadd.s32 %s30, 1
      %s32 = scalar_select %p29, %s30, %s31
      %p35 = pneg %p29
      %p36 = scmp.eq.s32.totalorder %s20, 2
      %p37 = por %p35, %p36
      %p38 = scmp.ne.s32.totalorder %s30, %s33
      %p39 = scmp.eq.s32.totalorder %s20, 0
      %p40 = por %p38, %p39
      %p41 = scmp.ne.s32.totalorder %s30, %s33
      %p42 = scmp.eq.s32.totalorder %s25, 2
      %p43 = por %p41, %p42
      %p44 = scmp.ne.s32.totalorder %s33, %s34
      %p45 = scmp.eq.s32.totalorder %s25, 0
      %p46 = por %p44, %p45
      %p47 = scmp.ne.s32.totalorder %s33, %s34
      %p48 = scmp.eq.s32.totalorder %s26, 2
      %p49 = por %p47, %p48
      %p51 = scmp.ne.s32.totalorder %s34, %s50
      %p52 = scmp.eq.s32.totalorder %s26, 0
      %p53 = por %p51, %p52
      %s55 = sadd.s32 %s54, 1
      %p58 = scmp.eq.s32.totalorder %s20, 2
      %p59 = scmp.ne.s32.totalorder %s54, %s56
      %p60 = scmp.eq.s32.totalorder %s20, 0
      %p61 = por %p59, %p60
      %p62 = scmp.ne.s32.totalorder %s54, %s56
      %p63 = scmp.eq.s32.totalorder %s25, 2
      %p64 = por %p62, %p63
      %p65 = scmp.ne.s32.totalorder %s56, %s57
      %p66 = scmp.eq.s32.totalorder %s25, 0
      %p67 = por %p65, %p66
      %p68 = scmp.ne.s32.totalorder %s56, %s57
      %p69 = scmp.eq.s32.totalorder %s26, 2
      %p70 = por %p68, %p69
      %p72 = scmp.ne.s32.totalorder %s57, %s71
      %p73 = scmp.eq.s32.totalorder %s26, 0
      %p74 = por %p72, %p73
      %s76 = sadd.s32 %s75, 1
      %p79 = scmp.eq.s32.totalorder %s20, 2
      %p80 = scmp.ne.s32.totalorder %s75, %s77
      %p81 = scmp.eq.s32.totalorder %s20, 0
      %p82 = por %p80, %p81
      %p83 = scmp.ne.s32.totalorder %s75, %s77
      %p84 = scmp.eq.s32.totalorder %s25, 2
      %p85 = por %p83, %p84
      %p86 = scmp.ne.s32.totalorder %s77, %s78
      %p87 = scmp.eq.s32.totalorder %s25, 0
      %p88 = por %p86, %p87
      %p89 = scmp.ne.s32.totalorder %s77, %s78
      %p90 = scmp.eq.s32.totalorder %s26, 2
      %p91 = por %p89, %p90
      %p93 = scmp.ne.s32.totalorder %s78, %s92
      %p94 = scmp.eq.s32.totalorder %s26, 0
      %p95 = por %p93, %p94
      %s97 = sadd.s32 %s96, 1
      %p100 = scmp.eq.s32.totalorder %s20, 2
      %p101 = scmp.ne.s32.totalorder %s96, %s98
      %p102 = scmp.eq.s32.totalorder %s20, 0
      %p103 = por %p101, %p102
      %p104 = scmp.ne.s32.totalorder %s96, %s98
      %p105 = scmp.eq.s32.totalorder %s25, 2
      %p106 = por %p104, %p105
      %p107 = scmp.ne.s32.totalorder %s98, %s99
      %p108 = scmp.eq.s32.totalorder %s25, 0
      %p109 = por %p107, %p108
      %p110 = scmp.ne.s32.totalorder %s98, %s99
      %p111 = scmp.eq.s32.totalorder %s26, 2
      %p112 = por %p110, %p111
      %p114 = scmp.ne.s32.totalorder %s99, %s113
      %p115 = scmp.eq.s32.totalorder %s26, 0
      %p116 = por %p114, %p115
      %s118 = sadd.s32 %s117, 1
      %p121 = scmp.eq.s32.totalorder %s20, 2
      %p122 = scmp.ne.s32.totalorder %s117, %s119
      %p123 = scmp.eq.s32.totalorder %s20, 0
      %p124 = por %p122, %p123
      %p125 = scmp.ne.s32.totalorder %s117, %s119
      %p126 = scmp.eq.s32.totalorder %s25, 2
      %p127 = por %p125, %p126
      %p128 = scmp.ne.s32.totalorder %s119, %s120
      %p129 = scmp.eq.s32.totalorder %s25, 0
      %p130 = por %p128, %p129
      %p131 = scmp.ne.s32.totalorder %s119, %s120
      %p132 = scmp.eq.s32.totalorder %s26, 2
      %p133 = por %p131, %p132
      %p135 = scmp.ne.s32.totalorder %s120, %s134
      %p136 = scmp.eq.s32.totalorder %s26, 0
      %p137 = por %p135, %p136
      %s139 = sadd.s32 %s138, 1
      %p142 = scmp.eq.s32.totalorder %s20, 2
      %p143 = scmp.ne.s32.totalorder %s138, %s140
      %p144 = scmp.eq.s32.totalorder %s20, 0
      %p145 = por %p143, %p144
      %p146 = scmp.ne.s32.totalorder %s138, %s140
      %p147 = scmp.eq.s32.totalorder %s25, 2
      %p148 = por %p146, %p147
      %p149 = scmp.ne.s32.totalorder %s140, %s141
      %p150 = scmp.eq.s32.totalorder %s25, 0
      %p151 = por %p149, %p150
      %p152 = scmp.ne.s32.totalorder %s140, %s141
      %p153 = scmp.eq.s32.totalorder %s26, 2
      %p154 = por %p152, %p153
      %p156 = scmp.ne.s32.totalorder %s141, %s155
      %p157 = scmp.eq.s32.totalorder %s26, 0
      %p158 = por %p156, %p157
      %s160 = sadd.s32 %s159, 1
      %p163 = scmp.eq.s32.totalorder %s20, 2
      %p164 = scmp.ne.s32.totalorder %s159, %s161
      %p165 = scmp.eq.s32.totalorder %s20, 0
      %p166 = por %p164, %p165
      %p167 = scmp.ne.s32.totalorder %s159, %s161
      %p168 = scmp.eq.s32.totalorder %s25, 2
      %p169 = por %p167, %p168
      %p170 = scmp.ne.s32.totalorder %s161, %s162
      %p171 = scmp.eq.s32.totalorder %s25, 0
      %p172 = por %p170, %p171
      %p173 = scmp.ne.s32.totalorder %s161, %s162
      %p174 = scmp.eq.s32.totalorder %s26, 2
      %p175 = por %p173, %p174
      %p177 = scmp.ne.s32.totalorder %s162, %s176
      %p178 = scmp.eq.s32.totalorder %s26, 0
      %p179 = por %p177, %p178
      %s181 = sadd.s32 %s180, 1
      %p184 = scmp.eq.s32.totalorder %s20, 2
      %p185 = scmp.ne.s32.totalorder %s180, %s182
      %p186 = scmp.eq.s32.totalorder %s20, 0
      %p187 = por %p185, %p186
      %p188 = scmp.ne.s32.totalorder %s180, %s182
      %p189 = scmp.eq.s32.totalorder %s25, 2
      %p190 = por %p188, %p189
      %p191 = scmp.ne.s32.totalorder %s182, %s183
      %p192 = scmp.eq.s32.totalorder %s25, 0
      %p193 = por %p191, %p192
      %p194 = scmp.ne.s32.totalorder %s182, %s183
      %p195 = scmp.eq.s32.totalorder %s26, 2
      %p196 = por %p194, %p195
      %p198 = scmp.ne.s32.totalorder %s183, %s197
      %p199 = scmp.eq.s32.totalorder %s26, 0
      %p200 = por %p198, %p199
      %s202 = sadd.s32 %s201, 1
      %p205 = scmp.eq.s32.totalorder %s20, 2
      %p206 = scmp.ne.s32.totalorder %s201, %s203
      %p207 = scmp.eq.s32.totalorder %s20, 0
      %p208 = por %p206, %p207
      %p209 = scmp.ne.s32.totalorder %s201, %s203
      %p210 = scmp.eq.s32.totalorder %s25, 2
      %p211 = por %p209, %p210
      %p212 = scmp.ne.s32.totalorder %s203, %s204
      %p213 = scmp.eq.s32.totalorder %s25, 0
      %p214 = por %p212, %p213
      %p215 = scmp.ne.s32.totalorder %s203, %s204
      %p216 = scmp.eq.s32.totalorder %s26, 2
      %p217 = por %p215, %p216
      %p219 = scmp.ne.s32.totalorder %s204, %s218
      %p220 = scmp.eq.s32.totalorder %s26, 0
      %p221 = por %p219, %p220
      %s223 = sadd.s32 %s222, 1
      %p226 = scmp.eq.s32.totalorder %s20, 2
      %p227 = scmp.ne.s32.totalorder %s222, %s224
      %p228 = scmp.eq.s32.totalorder %s20, 0
      %p229 = por %p227, %p228
      %p230 = scmp.ne.s32.totalorder %s222, %s224
      %p231 = scmp.eq.s32.totalorder %s25, 2
      %p232 = por %p230, %p231
      %p233 = scmp.ne.s32.totalorder %s224, %s225
      %p234 = scmp.eq.s32.totalorder %s25, 0
      %p235 = por %p233, %p234
      %p236 = scmp.ne.s32.totalorder %s224, %s225
      %p237 = scmp.eq.s32.totalorder %s26, 2
      %p238 = por %p236, %p237
      %p240 = scmp.ne.s32.totalorder %s225, %s239
      %p241 = scmp.eq.s32.totalorder %s26, 0
      %p242 = por %p240, %p241
      %s244 = sadd.s32 %s243, 1
      %p247 = scmp.eq.s32.totalorder %s20, 2
      %p248 = scmp.ne.s32.totalorder %s243, %s245
      %p249 = scmp.eq.s32.totalorder %s20, 0
      %p250 = por %p248, %p249
      %p251 = scmp.ne.s32.totalorder %s243, %s245
      %p252 = scmp.eq.s32.totalorder %s25, 2
      %p253 = por %p251, %p252
      %p254 = scmp.ne.s32.totalorder %s245, %s246
      %p255 = scmp.eq.s32.totalorder %s25, 0
      %p256 = por %p254, %p255
      %p257 = scmp.ne.s32.totalorder %s245, %s246
      %p258 = scmp.eq.s32.totalorder %s26, 2
      %p259 = por %p257, %p258
      %p261 = scmp.ne.s32.totalorder %s246, %s260
      %p262 = scmp.eq.s32.totalorder %s26, 0
      %p263 = por %p261, %p262
      %s264 = ssub.s32 %s20, %s27
      %p265 = scmp.eq.s32.totalorder %s264, 0
      %s267 = sadd.s32 %s266, 1
      %s268 = scalar_select %p265, %s266, %s267
      %p271 = pneg %p265
      %p272 = scmp.eq.s32.totalorder %s20, 2
      %p273 = por %p271, %p272
      %p274 = scmp.ne.s32.totalorder %s266, %s269
      %p275 = scmp.eq.s32.totalorder %s20, 0
      %p276 = por %p274, %p275
      %p277 = scmp.ne.s32.totalorder %s266, %s269
      %p278 = scmp.eq.s32.totalorder %s25, 2
      %p279 = por %p277, %p278
      %p280 = scmp.ne.s32.totalorder %s269, %s270
      %p281 = scmp.eq.s32.totalorder %s25, 0
      %p282 = por %p280, %p281
      %p283 = scmp.ne.s32.totalorder %s269, %s270
      %p284 = scmp.eq.s32.totalorder %s26, 2
      %p285 = por %p283, %p284
      %p287 = scmp.ne.s32.totalorder %s270, %s286
      %p288 = scmp.eq.s32.totalorder %s26, 0
      %p289 = por %p287, %p288
      %p290 = scmp.le.s32.totalorder 1, %s20
      %p291 = scmp.lt.s32.totalorder %s20, 4
      %p292 = pnand %p290, %p291
      %p293 = pneg %p292
      // Predicated region
      $region9: #{tpu_custom_call.1} parent=5 // pred_check
        _
      $region10: #{tpu_custom_call.1} parent=5 // pred_check_branch
        %295 = sbr.rel (%p292) target = $region12
      $region11: #{tpu_custom_call.1} parent=5 // pred_region
        %s296 = ssub.s32 %s20, 1
        // Predicated region
        $region13: #{tpu_custom_call.1} parent=11 // pred_check
          %p297 = pneg %p67
        $region14: #{tpu_custom_call.1} parent=11 // pred_check_branch
          %299 = sbr.rel (%p297) target = $region16
        $region15: #{tpu_custom_call.1} parent=11 // pred_region
          _
        $region16: #{tpu_custom_call.1} parent=11 // pred_fallthru
          _
        // Predicated region
        $region17: #{tpu_custom_call.1} parent=11 // pred_check
          %p300 = pneg %p88
        $region18: #{tpu_custom_call.1} parent=11 // pred_check_branch
          %302 = sbr.rel (%p300) target = $region20
        $region19: #{tpu_custom_call.1} parent=11 // pred_region
          _
        $region20: #{tpu_custom_call.1} parent=11 // pred_fallthru
          _
        // Predicated region
        $region21: #{tpu_custom_call.1} parent=11 // pred_check
          %p303 = pneg %p109
        $region22: #{tpu_custom_call.1} parent=11 // pred_check_branch
          %305 = sbr.rel (%p303) target = $region24
        $region23: #{tpu_custom_call.1} parent=11 // pred_region
          _
        $region24: #{tpu_custom_call.1} parent=11 // pred_fallthru
          _
        // Predicated region
        $region25: #{tpu_custom_call.1} parent=11 // pred_check
          %p306 = pneg %p130
        $region26: #{tpu_custom_call.1} parent=11 // pred_check_branch
          %308 = sbr.rel (%p306) target = $region28
        $region27: #{tpu_custom_call.1} parent=11 // pred_region
          _
        $region28: #{tpu_custom_call.1} parent=11 // pred_fallthru
          _
        // Predicated region
        $region29: #{tpu_custom_call.1} parent=11 // pred_check
          %p309 = pneg %p151
        $region30: #{tpu_custom_call.1} parent=11 // pred_check_branch
          %311 = sbr.rel (%p309) target = $region32
        $region31: #{tpu_custom_call.1} parent=11 // pred_region
          _
        $region32: #{tpu_custom_call.1} parent=11 // pred_fallthru
          _
        // Predicated region
        $region33: #{tpu_custom_call.1} parent=11 // pred_check
          %p312 = pneg %p172
        $region34: #{tpu_custom_call.1} parent=11 // pred_check_branch
          %314 = sbr.rel (%p312) target = $region36
        $region35: #{tpu_custom_call.1} parent=11 // pred_region
          _
        $region36: #{tpu_custom_call.1} parent=11 // pred_fallthru
          _
        // Predicated region
        $region37: #{tpu_custom_call.1} parent=11 // pred_check
          %p315 = pneg %p193
        $region38: #{tpu_custom_call.1} parent=11 // pred_check_branch
          %317 = sbr.rel (%p315) target = $region40
        $region39: #{tpu_custom_call.1} parent=11 // pred_region
          _
        $region40: #{tpu_custom_call.1} parent=11 // pred_fallthru
          _
        // Predicated region
        $region41: #{tpu_custom_call.1} parent=11 // pred_check
          %p318 = pneg %p214
        $region42: #{tpu_custom_call.1} parent=11 // pred_check_branch
          %320 = sbr.rel (%p318) target = $region44
        $region43: #{tpu_custom_call.1} parent=11 // pred_region
          _
        $region44: #{tpu_custom_call.1} parent=11 // pred_fallthru
          _
        // Predicated region
        $region45: #{tpu_custom_call.1} parent=11 // pred_check
          %p321 = pneg %p235
        $region46: #{tpu_custom_call.1} parent=11 // pred_check_branch
          %323 = sbr.rel (%p321) target = $region48
        $region47: #{tpu_custom_call.1} parent=11 // pred_region
          _
        $region48: #{tpu_custom_call.1} parent=11 // pred_fallthru
          _
        // Predicated region
        $region49: #{tpu_custom_call.1} parent=11 // pred_check
          %p324 = pneg %p256
        $region50: #{tpu_custom_call.1} parent=11 // pred_check_branch
          %326 = sbr.rel (%p324) target = $region52
        $region51: #{tpu_custom_call.1} parent=11 // pred_region
          _
        $region52: #{tpu_custom_call.1} parent=11 // pred_fallthru
          _
      $region12: #{tpu_custom_call.1} parent=5 // pred_fallthru
        _
      %p327 = scmp.lt.s32.totalorder %s20, 3
      // Predicated region
      $region53: #{tpu_custom_call.1} parent=5 // pred_check
        %p328 = pneg %p327
      $region54: #{tpu_custom_call.1} parent=5 // pred_check_branch
        %330 = sbr.rel (%p328) target = $region56
      $region55: #{tpu_custom_call.1} parent=5 // pred_region
        // Predicated region
        $region57: #{tpu_custom_call.1} parent=55 // pred_check
          %p331 = pneg %p40
        $region58: #{tpu_custom_call.1} parent=55 // pred_check_branch
          %333 = sbr.rel (%p331) target = $region60
        $region59: #{tpu_custom_call.1} parent=55 // pred_region
          %p334 = scmp.lt.s32.totalorder %s20, 2
          %s335 = scalar_select %p334, %s20, 2
          %s336 = smul.addr %s335, 8
          %s337 = scalar_lea.vmem %s0, %s336
        $region60: #{tpu_custom_call.1} parent=55 // pred_fallthru
          _
      $region56: #{tpu_custom_call.1} parent=5 // pred_fallthru
        _
      %p338 = scmp.le.s32.totalorder 1, %s20
      %p339 = scmp.lt.s32.totalorder %s20, 4
      %p340 = pnand %p338, %p339
      %p341 = pneg %p340
      // Predicated region
      $region61: #{tpu_custom_call.1} parent=5 // pred_check
        _
      $region62: #{tpu_custom_call.1} parent=5 // pred_check_branch
        %343 = sbr.rel (%p340) target = $region64
      $region63: #{tpu_custom_call.1} parent=5 // pred_region
        %s344 = ssub.s32 %s20, 1
        %p345 = scmp.lt.s32.totalorder %s25, 2
        %s346 = scalar_select %p345, %s25, 2
        %s347 = smul.addr %s346, 8
        %s348 = scalar_lea.vmem %s0, %s347
        %p349 = pneg %p46
        %p350 = pneg %p43
        %p351 = pneg %p67
        %p352 = pneg %p64
        %p353 = pneg %p88
        %p354 = pneg %p85
        %p355 = pneg %p109
        %p356 = pneg %p106
        %p357 = pneg %p130
        %p358 = pneg %p127
        %p359 = pneg %p151
        %p360 = pneg %p148
        %p361 = pneg %p172
        %p362 = pneg %p169
        %p363 = pneg %p193
        %p364 = pneg %p190
        %p365 = pneg %p214
        %p366 = pneg %p211
        %p367 = pneg %p235
        %p368 = pneg %p232
        %p369 = pneg %p256
        %p370 = pneg %p253
        %p371 = pneg %p282
        %p372 = pneg %p279
        %s373 = sand.u32 %s269, 1
        %s374 = scalar_lea.sflag [#allocation3], %s373
        %s375 = sand.u32 %s269, 1
        %s376 = smul.addr %s375, 28
        %s377 = scalar_lea.vmem [#allocation2], %s376
        %p378 = scmp.lt.s32.totalorder %s25, 2
        %s379 = scalar_select %p378, %s25, 2
        %s380 = smul.addr %s379, 8
        %s381 = scalar_lea.vmem %s0, %s380
        %v383 = vld [vmem:[%s381] sm:$0xff]
        %v384 = vld [vmem:[%s1] sm:$0x3]
        %386 = vset.pattern.permute.xlu0 0
        %387 = vperm.xlu0 %386, %v383
        %v388 = vpop.permute.xlu0 %387
        %v390 = vperm.slane %v384, 0
        %v391 = vmul.f32 %v388, %v390
        %392 = vset.pattern.permute.xlu0 1
        %393 = vperm.xlu0 %392, %v383
        %v394 = vpop.permute.xlu0 %393
        %v396 = vperm.slane %v384, 1
        %v397 = vmul.f32 %v394, %v396
        %v398 = vadd.f32 %v391, %v397
        %v399 = vld [vmem:[%s2] sm:$0x1]
        %v401 = vperm.slane %v399, 0
        %v403 = vadd.f32 %v398, %v401
        %v404 = vmax.f32 %v403, 0.0
        %v405 = vpack.c.bf16 %v404, %v404
        %v406 = vld [vmem:[%s3] sm:$0xf]
        %v407 = vld [vmem:[%s3 + $0x4] sm:$0xf]
        %v408 = vld [vmem:[%s4] sm:$0x1]
        %v410 = vperm.slane %v408, 0
        %v414 = vunpack.c.l.b16 %v406
        %v415 = vunpack.c.l.b16 %v407
        %v416 = vpack.c.b16 %v415, %v414
        %vm418 = vcmask 130048
        %v420 = vsel %vm418, %v405, 0
        %422 = vmatpush.bf16.msra.mxu0 0
        %423 = vmatpush.bf16.msra.mxu0 0
        %424 = vmatpush.bf16.msra.mxu0 0
        %425 = vmatpush.bf16.msra.mxu0 0
        %426 = vmatpush.bf16.msra.mxu0 0
        %427 = vmatpush.bf16.msra.mxu0 0
        %428 = vmatpush.bf16.msra.mxu0 0
        %429 = vmatpush.bf16.msra.mxu0 %v416
        %430 = vmatmul.bf16.gmra.mxu0 %v420
        %v431 = vpop.f32.mrf.mxu0
        %v432 = vadd.f32 %v410, %v431
        %v433 = vpop.f32.mrf.mxu0
        %434 = vdwg.mxu0
        %v435 = vmax.f32 %v432, 0.0
        %v436 = vpack.c.bf16 %v435, %v435
        %v437 = vld [vmem:[%s5] sm:$0xf]
        %v438 = vld [vmem:[%s5 + $0x4] sm:$0xf]
        %v439 = vld [vmem:[%s5 + $0x8] sm:$0xf]
        %v440 = vld [vmem:[%s5 + $0xc] sm:$0xf]
        %v441 = vld [vmem:[%s6] sm:$0x1]
        %v443 = vperm.slane %v441, 0
        %v449 = vunpack.c.l.b16 %v437
        %v450 = vunpack.c.l.b16 %v438
        %v451 = vunpack.c.l.b16 %v439
        %v452 = vunpack.c.l.b16 %v440
        %v453 = vpack.c.b16 %v450, %v449
        %v454 = vpack.c.b16 %v452, %v451
        %vm457 = vcmask 261120
        %v459 = vsel %vm457, %v436, 0
        %461 = vmatpush.bf16.msra.mxu0 0
        %462 = vmatpush.bf16.msra.mxu0 0
        %463 = vmatpush.bf16.msra.mxu0 0
        %464 = vmatpush.bf16.msra.mxu0 0
        %465 = vmatpush.bf16.msra.mxu0 0
        %466 = vmatpush.bf16.msra.mxu0 0
        %467 = vmatpush.bf16.msra.mxu0 %v454
        %468 = vmatpush.bf16.msra.mxu0 %v453
        %469 = vmatmul.bf16.gmra.mxu0 %v459
        %v470 = vpop.f32.mrf.mxu0
        %v471 = vadd.f32 %v443, %v470
        %v472 = vpop.f32.mrf.mxu0
        %473 = vdwg.mxu0
        %v474 = vmax.f32 %v471, 0.0
        %v475 = vpack.c.bf16 %v474, %v474
        %v476 = vld [vmem:[%s7] sm:$0xf]
        %v477 = vld [vmem:[%s7 + $0x4] sm:$0xf]
        %v478 = vld [vmem:[%s7 + $0x8] sm:$0xf]
        %v479 = vld [vmem:[%s7 + $0xc] sm:$0xf]
        %v480 = vld [vmem:[%s7 + $0x10] sm:$0xf]
        %v481 = vld [vmem:[%s7 + $0x14] sm:$0xf]
        %v482 = vld [vmem:[%s7 + $0x18] sm:$0xf]
        %v483 = vld [vmem:[%s7 + $0x1c] sm:$0xf]
        %v484 = vld [vmem:[%s8] sm:$0x1]
        %v486 = vperm.slane %v484, 0
        %v496 = vunpack.c.l.b16 %v476
        %v497 = vunpack.c.l.b16 %v477
        %v498 = vunpack.c.l.b16 %v478
        %v499 = vunpack.c.l.b16 %v479
        %v500 = vunpack.c.l.b16 %v480
        %v501 = vunpack.c.l.b16 %v481
        %v502 = vunpack.c.l.b16 %v482
        %v503 = vunpack.c.l.b16 %v483
        %v504 = vpack.c.b16 %v497, %v496
        %v505 = vpack.c.b16 %v499, %v498
        %v506 = vpack.c.b16 %v501, %v500
        %v507 = vpack.c.b16 %v503, %v502
        %vm512 = vcmask 523264
        %v514 = vsel %vm512, %v475, 0
        %516 = vmatpush.bf16.msra.mxu0 0
        %517 = vmatpush.bf16.msra.mxu0 0
        %518 = vmatpush.bf16.msra.mxu0 0
        %519 = vmatpush.bf16.msra.mxu0 0
        %520 = vmatpush.bf16.msra.mxu0 %v507
        %521 = vmatpush.bf16.msra.mxu0 %v506
        %522 = vmatpush.bf16.msra.mxu0 %v505
        %523 = vmatpush.bf16.msra.mxu0 %v504
        %524 = vmatmul.bf16.gmra.mxu0 %v514
        %v525 = vpop.f32.mrf.mxu0
        %v526 = vadd.f32 %v486, %v525
        %v527 = vpop.f32.mrf.mxu0
        %528 = vdwg.mxu0
        %v529 = vmax.f32 %v526, 0.0
        %v530 = vpack.c.bf16 %v529, %v529
        %v531 = vld [vmem:[%s9] sm:$0xff]
        %v532 = vld [vmem:[%s9 + $0x8] sm:$0xff]
        %v533 = vld [vmem:[%s9 + $0x10] sm:$0xff]
        %v534 = vld [vmem:[%s9 + $0x18] sm:$0xf]
        %v535 = vld [vmem:[%s9 + $0x1c] sm:$0xff]
        %v536 = vld [vmem:[%s9 + $0x24] sm:$0xff]
        %v537 = vld [vmem:[%s9 + $0x2c] sm:$0xff]
        %v538 = vld [vmem:[%s9 + $0x34] sm:$0xf]
        %v539 = vld [vmem:[%s9 + $0x38] sm:$0xff]
        %v540 = vld [vmem:[%s9 + $0x40] sm:$0xff]
        %v541 = vld [vmem:[%s9 + $0x48] sm:$0xff]
        %v542 = vld [vmem:[%s9 + $0x50] sm:$0xf]
        %v543 = vld [vmem:[%s9 + $0x54] sm:$0xff]
        %v544 = vld [vmem:[%s9 + $0x5c] sm:$0xff]
        %v545 = vld [vmem:[%s9 + $0x64] sm:$0xff]
        %v546 = vld [vmem:[%s9 + $0x6c] sm:$0xf]
        %v547 = vld [vmem:[%s9 + $0x70] sm:$0xff]
        %v548 = vld [vmem:[%s9 + $0x78] sm:$0xff]
        %v549 = vld [vmem:[%s9 + $0x80] sm:$0xff]
        %v550 = vld [vmem:[%s9 + $0x88] sm:$0xf]
        %v551 = vld [vmem:[%s9 + $0x8c] sm:$0xff]
        %v552 = vld [vmem:[%s9 + $0x94] sm:$0xff]
        %v553 = vld [vmem:[%s9 + $0x9c] sm:$0xff]
        %v554 = vld [vmem:[%s9 + $0xa4] sm:$0xf]
        %v555 = vld [vmem:[%s9 + $0xa8] sm:$0xff]
        %v556 = vld [vmem:[%s9 + $0xb0] sm:$0xff]
        %v557 = vld [vmem:[%s9 + $0xb8] sm:$0xff]
        %v558 = vld [vmem:[%s9 + $0xc0] sm:$0xf]
        %v559 = vld [vmem:[%s9 + $0xc4] sm:$0xff]
        %v560 = vld [vmem:[%s9 + $0xcc] sm:$0xff]
        %v561 = vld [vmem:[%s9 + $0xd4] sm:$0xff]
        %v562 = vld [vmem:[%s9 + $0xdc] sm:$0xf]
        %v563 = vld [vmem:[%s9 + $0xe0] sm:$0xff]
        %v564 = vld [vmem:[%s9 + $0xe8] sm:$0xff]
        %v565 = vld [vmem:[%s9 + $0xf0] sm:$0xff]
        %v566 = vld [vmem:[%s9 + $0xf8] sm:$0xf]
        %v567 = vld [vmem:[%s9 + $0xfc] sm:$0xff]
        %v568 = vld [vmem:[%s9 + $0x104] sm:$0xff]
        %v569 = vld [vmem:[%s9 + $0x10c] sm:$0xff]
        %v570 = vld [vmem:[%s9 + $0x114] sm:$0xf]
        %v571 = vld [vmem:[%s9 + $0x118] sm:$0xff]
        %v572 = vld [vmem:[%s9 + $0x120] sm:$0xff]
        %v573 = vld [vmem:[%s9 + $0x128] sm:$0xff]
        %v574 = vld [vmem:[%s9 + $0x130] sm:$0xf]
        %v575 = vld [vmem:[%s9 + $0x134] sm:$0xff]
        %v576 = vld [vmem:[%s9 + $0x13c] sm:$0xff]
        %v577 = vld [vmem:[%s9 + $0x144] sm:$0xff]
        %v578 = vld [vmem:[%s9 + $0x14c] sm:$0xf]
        %v579 = vld [vmem:[%s9 + $0x150] sm:$0xff]
        %v580 = vld [vmem:[%s9 + $0x158] sm:$0xff]
        %v581 = vld [vmem:[%s9 + $0x160] sm:$0xff]
        %v582 = vld [vmem:[%s9 + $0x168] sm:$0xf]
        %v583 = vld [vmem:[%s9 + $0x16c] sm:$0xff]
        %v584 = vld [vmem:[%s9 + $0x174] sm:$0xff]
        %v585 = vld [vmem:[%s9 + $0x17c] sm:$0xff]
        %v586 = vld [vmem:[%s9 + $0x184] sm:$0xf]
        %v587 = vld [vmem:[%s9 + $0x188] sm:$0xff]
        %v588 = vld [vmem:[%s9 + $0x190] sm:$0xff]
        %v589 = vld [vmem:[%s9 + $0x198] sm:$0xff]
        %v590 = vld [vmem:[%s9 + $0x1a0] sm:$0xf]
        %v591 = vld [vmem:[%s9 + $0x1a4] sm:$0xff]
        %v592 = vld [vmem:[%s9 + $0x1ac] sm:$0xff]
        %v593 = vld [vmem:[%s9 + $0x1b4] sm:$0xff]
        %v594 = vld [vmem:[%s9 + $0x1bc] sm:$0xf]
        %v595 = vld [vmem:[%s10] sm:$0x7f]
        %v597 = vperm.slane %v595, 0
        %v598 = vperm.slane %v595, 1
        %v599 = vperm.slane %v595, 2
        %v600 = vperm.slane %v595, 3
        %v601 = vperm.slane %v595, 4
        %v602 = vperm.slane %v595, 5
        %v603 = vperm.slane %v595, 6
        %v675 = vunpack.c.l.b16 %v531
        %v676 = vunpack.c.h.b16 %v531
        %v677 = vunpack.c.l.b16 %v532
        %v678 = vunpack.c.h.b16 %v532
        %v679 = vunpack.c.l.b16 %v533
        %v680 = vunpack.c.h.b16 %v533
        %v681 = vunpack.c.l.b16 %v534
        %v682 = vunpack.c.l.b16 %v535
        %v683 = vunpack.c.h.b16 %v535
        %v684 = vunpack.c.l.b16 %v536
        %v685 = vunpack.c.h.b16 %v536
        %v686 = vunpack.c.l.b16 %v537
        %v687 = vunpack.c.h.b16 %v537
        %v688 = vunpack.c.l.b16 %v538
        %v689 = vunpack.c.l.b16 %v539
        %v690 = vunpack.c.h.b16 %v539
        %v691 = vunpack.c.l.b16 %v540
        %v692 = vunpack.c.h.b16 %v540
        %v693 = vunpack.c.l.b16 %v541
        %v694 = vunpack.c.h.b16 %v541
        %v695 = vunpack.c.l.b16 %v542
        %v696 = vunpack.c.l.b16 %v543
        %v697 = vunpack.c.h.b16 %v543
        %v698 = vunpack.c.l.b16 %v544
        %v699 = vunpack.c.h.b16 %v544
        %v700 = vunpack.c.l.b16 %v545
        %v701 = vunpack.c.h.b16 %v545
        %v702 = vunpack.c.l.b16 %v546
        %v703 = vunpack.c.l.b16 %v547
        %v704 = vunpack.c.h.b16 %v547
        %v705 = vunpack.c.l.b16 %v548
        %v706 = vunpack.c.h.b16 %v548
        %v707 = vunpack.c.l.b16 %v549
        %v708 = vunpack.c.h.b16 %v549
        %v709 = vunpack.c.l.b16 %v550
        %v710 = vunpack.c.l.b16 %v551
        %v711 = vunpack.c.h.b16 %v551
        %v712 = vunpack.c.l.b16 %v552
        %v713 = vunpack.c.h.b16 %v552
        %v714 = vunpack.c.l.b16 %v553
        %v715 = vunpack.c.h.b16 %v553
        %v716 = vunpack.c.l.b16 %v554
        %v717 = vunpack.c.l.b16 %v555
        %v718 = vunpack.c.h.b16 %v555
        %v719 = vunpack.c.l.b16 %v556
        %v720 = vunpack.c.h.b16 %v556
        %v721 = vunpack.c.l.b16 %v557
        %v722 = vunpack.c.h.b16 %v557
        %v723 = vunpack.c.l.b16 %v558
        %v724 = vunpack.c.l.b16 %v559
        %v725 = vunpack.c.h.b16 %v559
        %v726 = vunpack.c.l.b16 %v560
        %v727 = vunpack.c.h.b16 %v560
        %v728 = vunpack.c.l.b16 %v561
        %v729 = vunpack.c.h.b16 %v561
        %v730 = vunpack.c.l.b16 %v562
        %v731 = vunpack.c.l.b16 %v563
        %v732 = vunpack.c.h.b16 %v563
        %v733 = vunpack.c.l.b16 %v564
        %v734 = vunpack.c.h.b16 %v564
        %v735 = vunpack.c.l.b16 %v565
        %v736 = vunpack.c.h.b16 %v565
        %v737 = vunpack.c.l.b16 %v566
        %v738 = vunpack.c.l.b16 %v567
        %v739 = vunpack.c.h.b16 %v567
        %v740 = vunpack.c.l.b16 %v568
        %v741 = vunpack.c.h.b16 %v568
        %v742 = vunpack.c.l.b16 %v569
        %v743 = vunpack.c.h.b16 %v569
        %v744 = vunpack.c.l.b16 %v570
        %v745 = vunpack.c.l.b16 %v571
        %v746 = vunpack.c.h.b16 %v571
        %v747 = vunpack.c.l.b16 %v572
        %v748 = vunpack.c.h.b16 %v572
        %v749 = vunpack.c.l.b16 %v573
        %v750 = vunpack.c.h.b16 %v573
        %v751 = vunpack.c.l.b16 %v574
        %v752 = vunpack.c.l.b16 %v575
        %v753 = vunpack.c.h.b16 %v575
        %v754 = vunpack.c.l.b16 %v576
        %v755 = vunpack.c.h.b16 %v576
        %v756 = vunpack.c.l.b16 %v577
        %v757 = vunpack.c.h.b16 %v577
        %v758 = vunpack.c.l.b16 %v578
        %v759 = vunpack.c.l.b16 %v579
        %v760 = vunpack.c.h.b16 %v579
        %v761 = vunpack.c.l.b16 %v580
        %v762 = vunpack.c.h.b16 %v580
        %v763 = vunpack.c.l.b16 %v581
        %v764 = vunpack.c.h.b16 %v581
        %v765 = vunpack.c.l.b16 %v582
        %v766 = vunpack.c.l.b16 %v583
        %v767 = vunpack.c.h.b16 %v583
        %v768 = vunpack.c.l.b16 %v584
        %v769 = vunpack.c.h.b16 %v584
        %v770 = vunpack.c.l.b16 %v585
        %v771 = vunpack.c.h.b16 %v585
        %v772 = vunpack.c.l.b16 %v586
        %v773 = vunpack.c.l.b16 %v587
        %v774 = vunpack.c.h.b16 %v587
        %v775 = vunpack.c.l.b16 %v588
        %v776 = vunpack.c.h.b16 %v588
        %v777 = vunpack.c.l.b16 %v589
        %v778 = vunpack.c.h.b16 %v589
        %v779 = vunpack.c.l.b16 %v590
        %v780 = vunpack.c.l.b16 %v591
        %v781 = vunpack.c.h.b16 %v591
        %v782 = vunpack.c.l.b16 %v592
        %v783 = vunpack.c.h.b16 %v592
        %v784 = vunpack.c.l.b16 %v593
        %v785 = vunpack.c.h.b16 %v593
        %v786 = vunpack.c.l.b16 %v594
        %v787 = vpack.c.b16 %v682, %v675
        %v788 = vpack.c.b16 %v683, %v676
        %v789 = vpack.c.b16 %v684, %v677
        %v790 = vpack.c.b16 %v685, %v678
        %v791 = vpack.c.b16 %v686, %v679
        %v792 = vpack.c.b16 %v687, %v680
        %v793 = vpack.c.b16 %v688, %v681
        %v794 = vpack.c.b16 %v696, %v689
        %v795 = vpack.c.b16 %v697, %v690
        %v796 = vpack.c.b16 %v698, %v691
        %v797 = vpack.c.b16 %v699, %v692
        %v798 = vpack.c.b16 %v700, %v693
        %v799 = vpack.c.b16 %v701, %v694
        %v800 = vpack.c.b16 %v702, %v695
        %v801 = vpack.c.b16 %v710, %v703
        %v802 = vpack.c.b16 %v711, %v704
        %v803 = vpack.c.b16 %v712, %v705
        %v804 = vpack.c.b16 %v713, %v706
        %v805 = vpack.c.b16 %v714, %v707
        %v806 = vpack.c.b16 %v715, %v708
        %v807 = vpack.c.b16 %v716, %v709
        %v808 = vpack.c.b16 %v724, %v717
        %v809 = vpack.c.b16 %v725, %v718
        %v810 = vpack.c.b16 %v726, %v719
        %v811 = vpack.c.b16 %v727, %v720
        %v812 = vpack.c.b16 %v728, %v721
        %v813 = vpack.c.b16 %v729, %v722
        %v814 = vpack.c.b16 %v730, %v723
        %v815 = vpack.c.b16 %v738, %v731
        %v816 = vpack.c.b16 %v739, %v732
        %v817 = vpack.c.b16 %v740, %v733
        %v818 = vpack.c.b16 %v741, %v734
        %v819 = vpack.c.b16 %v742, %v735
        %v820 = vpack.c.b16 %v743, %v736
        %v821 = vpack.c.b16 %v744, %v737
        %v822 = vpack.c.b16 %v752, %v745
        %v823 = vpack.c.b16 %v753, %v746
        %v824 = vpack.c.b16 %v754, %v747
        %v825 = vpack.c.b16 %v755, %v748
        %v826 = vpack.c.b16 %v756, %v749
        %v827 = vpack.c.b16 %v757, %v750
        %v828 = vpack.c.b16 %v758, %v751
        %v829 = vpack.c.b16 %v766, %v759
        %v830 = vpack.c.b16 %v767, %v760
        %v831 = vpack.c.b16 %v768, %v761
        %v832 = vpack.c.b16 %v769, %v762
        %v833 = vpack.c.b16 %v770, %v763
        %v834 = vpack.c.b16 %v771, %v764
        %v835 = vpack.c.b16 %v772, %v765
        %v836 = vpack.c.b16 %v780, %v773
        %v837 = vpack.c.b16 %v781, %v774
        %v838 = vpack.c.b16 %v782, %v775
        %v839 = vpack.c.b16 %v783, %v776
        %v840 = vpack.c.b16 %v784, %v777
        %v841 = vpack.c.b16 %v785, %v778
        %v842 = vpack.c.b16 %v786, %v779
        %899 = vmatpush.bf16.msra.mxu0 %v836
        %900 = vmatpush.bf16.msra.mxu0 %v829
        %901 = vmatpush.bf16.msra.mxu0 %v822
        %902 = vmatpush.bf16.msra.mxu0 %v815
        %903 = vmatpush.bf16.msra.mxu0 %v808
        %904 = vmatpush.bf16.msra.mxu0 %v801
        %905 = vmatpush.bf16.msra.mxu0 %v794
        %906 = vmatpush.bf16.msra.mxu0 %v787
        %907 = vmatmul.bf16.gmra.mxu0 %v530
        %v908 = vpop.f32.mrf.mxu0
        %v909 = vadd.f32 %v597, %v908
        %v910 = vpop.f32.mrf.mxu0
        %911 = vdwg.mxu0
        %912 = vmatpush.bf16.msra.mxu0 %v837
        %913 = vmatpush.bf16.msra.mxu0 %v830
        %914 = vmatpush.bf16.msra.mxu0 %v823
        %915 = vmatpush.bf16.msra.mxu0 %v816
        %916 = vmatpush.bf16.msra.mxu0 %v809
        %917 = vmatpush.bf16.msra.mxu0 %v802
        %918 = vmatpush.bf16.msra.mxu0 %v795
        %919 = vmatpush.bf16.msra.mxu0 %v788
        %920 = vmatmul.bf16.gmra.mxu0 %v530
        %v921 = vpop.f32.mrf.mxu0
        %v922 = vadd.f32 %v598, %v921
        %v923 = vpop.f32.mrf.mxu0
        %924 = vdwg.mxu0
        %925 = vmatpush.bf16.msra.mxu0 %v838
        %926 = vmatpush.bf16.msra.mxu0 %v831
        %927 = vmatpush.bf16.msra.mxu0 %v824
        %928 = vmatpush.bf16.msra.mxu0 %v817
        %929 = vmatpush.bf16.msra.mxu0 %v810
        %930 = vmatpush.bf16.msra.mxu0 %v803
        %931 = vmatpush.bf16.msra.mxu0 %v796
        %932 = vmatpush.bf16.msra.mxu0 %v789
        %933 = vmatmul.bf16.gmra.mxu0 %v530
        %v934 = vpop.f32.mrf.mxu0
        %v935 = vadd.f32 %v599, %v934
        %v936 = vpop.f32.mrf.mxu0
        %937 = vdwg.mxu0
        %938 = vmatpush.bf16.msra.mxu0 %v839
        %939 = vmatpush.bf16.msra.mxu0 %v832
        %940 = vmatpush.bf16.msra.mxu0 %v825
        %941 = vmatpush.bf16.msra.mxu0 %v818
        %942 = vmatpush.bf16.msra.mxu0 %v811
        %943 = vmatpush.bf16.msra.mxu0 %v804
        %944 = vmatpush.bf16.msra.mxu0 %v797
        %945 = vmatpush.bf16.msra.mxu0 %v790
        %946 = vmatmul.bf16.gmra.mxu0 %v530
        %v947 = vpop.f32.mrf.mxu0
        %v948 = vadd.f32 %v600, %v947
        %v949 = vpop.f32.mrf.mxu0
        %950 = vdwg.mxu0
        %951 = vmatpush.bf16.msra.mxu0 %v840
        %952 = vmatpush.bf16.msra.mxu0 %v833
        %953 = vmatpush.bf16.msra.mxu0 %v826
        %954 = vmatpush.bf16.msra.mxu0 %v819
        %955 = vmatpush.bf16.msra.mxu0 %v812
        %956 = vmatpush.bf16.msra.mxu0 %v805
        %957 = vmatpush.bf16.msra.mxu0 %v798
        %958 = vmatpush.bf16.msra.mxu0 %v791
        %959 = vmatmul.bf16.gmra.mxu0 %v530
        %v960 = vpop.f32.mrf.mxu0
        %v961 = vadd.f32 %v601, %v960
        %v962 = vpop.f32.mrf.mxu0
        %963 = vdwg.mxu0
        %964 = vmatpush.bf16.msra.mxu0 %v841
        %965 = vmatpush.bf16.msra.mxu0 %v834
        %966 = vmatpush.bf16.msra.mxu0 %v827
        %967 = vmatpush.bf16.msra.mxu0 %v820
        %968 = vmatpush.bf16.msra.mxu0 %v813
        %969 = vmatpush.bf16.msra.mxu0 %v806
        %970 = vmatpush.bf16.msra.mxu0 %v799
        %971 = vmatpush.bf16.msra.mxu0 %v792
        %972 = vmatmul.bf16.gmra.mxu0 %v530
        %v973 = vpop.f32.mrf.mxu0
        %v974 = vadd.f32 %v602, %v973
        %v975 = vpop.f32.mrf.mxu0
        %976 = vdwg.mxu0
        %977 = vmatpush.bf16.msra.mxu0 %v842
        %978 = vmatpush.bf16.msra.mxu0 %v835
        %979 = vmatpush.bf16.msra.mxu0 %v828
        %980 = vmatpush.bf16.msra.mxu0 %v821
        %981 = vmatpush.bf16.msra.mxu0 %v814
        %982 = vmatpush.bf16.msra.mxu0 %v807
        %983 = vmatpush.bf16.msra.mxu0 %v800
        %984 = vmatpush.bf16.msra.mxu0 %v793
        %985 = vmatmul.bf16.gmra.mxu0 %v530
        %v986 = vpop.f32.mrf.mxu0
        %v987 = vadd.f32 %v603, %v986
        %v988 = vpop.f32.mrf.mxu0
        %989 = vdwg.mxu0
        %v990 = vpack.c.bf16 %v922, %v909
        %v991 = vpack.c.bf16 %v948, %v935
        %v992 = vpack.c.bf16 %v974, %v961
        %v993 = vpack.c.bf16 %v987, %v987
        %994 = vst [vmem:[%s377] sm:$0xff] %v990
        %995 = vst [vmem:[%s377 + $0x8] sm:$0xff] %v991
        %996 = vst [vmem:[%s377 + $0x10] sm:$0xff] %v992
        %vm997 = vcmask 125952
        %998 = vst.msk [vmem:[%s377 + $0x18] sm:$0xf] %vm997, %v993
        %s999 = sand.u32 %s269, 1
        %s1000 = scalar_lea.sflag [#allocation3], %s999
        %s1001 = sand.u32 %s269, 1
        %s1002 = smul.addr %s1001, 28
        %s1003 = scalar_lea.vmem [#allocation2], %s1002
        // Predicated region
        $region65: #{tpu_custom_call.1} parent=63 // pred_check
          %p1004 = pneg %p279
        $region66: #{tpu_custom_call.1} parent=63 // pred_check_branch
          %1006 = sbr.rel (%p1004) target = $region68
        $region67: #{tpu_custom_call.1} parent=63 // pred_region
          %1008 = vsyncadd %s1000, 0
          %s1009 = smul.addr %s25, 7
          %s1010 = smul.addr %s1009, 4
          %s1011 = scalar_lea.hbm %s11, %s1010
          %s1013 = sshll.u32 %s1003, 4
          %s1014 = int_to_ptr.vmem [resolvable:$true] %s1013
          %s1015 = sshll.u32 %s1011, 4
          %s1016 = int_to_ptr.hbm [resolvable:$true] %s1015
          %1018 = dma.vmem_to_hbm [thread:$0]  %s1014, 448, %s1016, %s1000
        $region68: #{tpu_custom_call.1} parent=63 // pred_fallthru
          _
      $region64: #{tpu_custom_call.1} parent=5 // pred_fallthru
        _
      %p1019 = scmp.le.s32.totalorder 2, %s20
      // Predicated region
      $region69: #{tpu_custom_call.1} parent=5 // pred_check
        %p1020 = pneg %p1019
      $region70: #{tpu_custom_call.1} parent=5 // pred_check_branch
        %1022 = sbr.rel (%p1020) target = $region72
      $region71: #{tpu_custom_call.1} parent=5 // pred_region
        %s1023 = ssub.s32 %s20, 2
        // Predicated region
        $region73: #{tpu_custom_call.1} parent=71 // pred_check
          %p1024 = pneg %p285
        $region74: #{tpu_custom_call.1} parent=71 // pred_check_branch
          %1026 = sbr.rel (%p1024) target = $region76
        $region75: #{tpu_custom_call.1} parent=71 // pred_region
          %s1027 = sand.u32 %s270, 1
          %s1028 = scalar_lea.sflag [#allocation3], %s1027
          %s1029 = sand.u32 %s270, 1
          %s1030 = smul.addr %s1029, 28
          %s1031 = scalar_lea.vmem [#allocation2], %s1030
          %1033 = dma.done %s1028, 448
        $region76: #{tpu_custom_call.1} parent=71 // pred_fallthru
          _
      $region72: #{tpu_custom_call.1} parent=5 // pred_fallthru
        _
    $region6: #{tpu_custom_call.1} parent=1 // loop_footer
      %s24 = sadd.s32 1, %s20
    $region7: #{tpu_custom_call.1} parent=1 // loop_footer_branch
      %19 = sbr.rel target = $region3
    $region8: #{tpu_custom_call.1} parent=1 // loop_exit
      _
    %1034 = vsyncpa [#allocation3], 1
    %s1035 = scalar_lea.sflag [#allocation3], 1
    %1036 = vsyncpa %s1035, 1

// kernel: tpu_custom_call.1
$region0: #{tpu_custom_call.1}
  #allocation0 [shape = 'u32[]', space=smem, size = 0x4, offset = 0x4, fixed_abs, tag = 'smem constant byte address 0x4 - core index']
  #allocation1 [shape = 'u32[72,128]{1,0:T(1,128)}', space=vmem, size = 0x9000, scoped, tag = 'internal scratch']
  %s0 = inlined_call_operand.vmem [shape: f32[24,2], index: 0, kind: input, shape index: {}]
  %s1 = inlined_call_operand.vmem [shape: f32[2,16], index: 1, kind: input, shape index: {}]
  %s2 = inlined_call_operand.vmem [shape: f32[1,16], index: 2, kind: input, shape index: {}]
  %s3 = inlined_call_operand.vmem [shape: bf16[16,32], index: 3, kind: input, shape index: {}]
  %s4 = inlined_call_operand.vmem [shape: f32[1,32], index: 4, kind: input, shape index: {}]
  %s5 = inlined_call_operand.vmem [shape: bf16[32,64], index: 5, kind: input, shape index: {}]
  %s6 = inlined_call_operand.vmem [shape: f32[1,64], index: 6, kind: input, shape index: {}]
  %s7 = inlined_call_operand.vmem [shape: bf16[64,128], index: 7, kind: input, shape index: {}]
  %s8 = inlined_call_operand.vmem [shape: f32[1,128], index: 8, kind: input, shape index: {}]
  %s9 = inlined_call_operand.vmem [shape: bf16[128,784], index: 9, kind: input, shape index: {}]
  %s10 = inlined_call_operand.vmem [shape: f32[1,784], index: 10, kind: input, shape index: {}]
  %s11 = inlined_call_operand.hbm [shape: bf16[24,784], index: 11, kind: output, shape index: {}]
  %s12 = sld [smem:[#allocation0]]
  $region77: #{tpu_custom_call.1} parent=0
    _
  %s14 = ssub.s32 1, %s12
  %s15 = scalar_select 0, %s14, %s12
  $region1: #{tpu_custom_call.1} parent=0
    #allocation2 [shape = 'u8[28672]{0}', space=vmem, size = 0x7000, scoped, tag = 'output window, operand 0']
    #allocation3 [shape = 's32[2]{0}', space=sflag, size = 0x8, scoped, tag = 'scoped memory for tpu_custom_call.1']
    %16 = vsyncpa [#allocation3], 0
    %s17 = scalar_lea.sflag [#allocation3], 1
    %18 = vsyncpa %s17, 0
    loop: start=0, step=1, limit=5
    $region2: #{tpu_custom_call.1} parent=1 // loop_pre_header
      _
    $region3: #{tpu_custom_call.1} parent=1 // loop_header
      %s20 = sphi 0, %s24
      %p21 = scmp.ge.s32.totalorder %s20, 5
      %s30 = sphi 0, %s32
      %s33 = sphi 0, %s30
      %s34 = sphi 0, %s33
      %s50 = sphi 0, %s34
      %s54 = sphi 0, %s54
      %s56 = sphi 0, %s54
      %s57 = sphi 0, %s56
      %s71 = sphi 0, %s57
      %s75 = sphi 0, %s75
      %s77 = sphi 0, %s75
      %s78 = sphi 0, %s77
      %s92 = sphi 0, %s78
      %s96 = sphi 0, %s96
      %s98 = sphi 0, %s96
      %s99 = sphi 0, %s98
      %s113 = sphi 0, %s99
      %s117 = sphi 0, %s117
      %s119 = sphi 0, %s117
      %s120 = sphi 0, %s119
      %s134 = sphi 0, %s120
      %s138 = sphi 0, %s138
      %s140 = sphi 0, %s138
      %s141 = sphi 0, %s140
      %s155 = sphi 0, %s141
      %s159 = sphi 0, %s159
      %s161 = sphi 0, %s159
      %s162 = sphi 0, %s161
      %s176 = sphi 0, %s162
      %s180 = sphi 0, %s180
      %s182 = sphi 0, %s180
      %s183 = sphi 0, %s182
      %s197 = sphi 0, %s183
      %s201 = sphi 0, %s201
      %s203 = sphi 0, %s201
      %s204 = sphi 0, %s203
      %s218 = sphi 0, %s204
      %s222 = sphi 0, %s222
      %s224 = sphi 0, %s222
      %s225 = sphi 0, %s224
      %s239 = sphi 0, %s225
      %s243 = sphi 0, %s243
      %s245 = sphi 0, %s243
      %s246 = sphi 0, %s245
      %s260 = sphi 0, %s246
      %s266 = sphi 0, %s268
      %s269 = sphi 0, %s266
      %s270 = sphi 0, %s269
      %s286 = sphi 0, %s270
    $region4: #{tpu_custom_call.1} parent=1 // loop_header_branch
      %23 = sbr.rel (%p21) target = $region8
    $region5: #{tpu_custom_call.1} parent=1 // loop_body
      %s25 = ssub.s32 %s20, 1
      %s26 = ssub.s32 %s20, 2
      %s27 = sadd.s32 %s20, 1
      %s28 = ssub.s32 %s20, %s27
      %p29 = scmp.eq.s32.totalorder %s28, 0
      %s31 = sadd.s32 %s30, 1
      %s32 = scalar_select %p29, %s30, %s31
      %p35 = pneg %p29
      %p36 = scmp.eq.s32.totalorder %s20, 2
      %p37 = por %p35, %p36
      %p38 = scmp.ne.s32.totalorder %s30, %s33
      %p39 = scmp.eq.s32.totalorder %s20, 0
      %p40 = por %p38, %p39
      %p41 = scmp.ne.s32.totalorder %s30, %s33
      %p42 = scmp.eq.s32.totalorder %s25, 2
      %p43 = por %p41, %p42
      %p44 = scmp.ne.s32.totalorder %s33, %s34
      %p45 = scmp.eq.s32.totalorder %s25, 0
      %p46 = por %p44, %p45
      %p47 = scmp.ne.s32.totalorder %s33, %s34
      %p48 = scmp.eq.s32.totalorder %s26, 2
      %p49 = por %p47, %p48
      %p51 = scmp.ne.s32.totalorder %s34, %s50
      %p52 = scmp.eq.s32.totalorder %s26, 0
      %p53 = por %p51, %p52
      %s55 = sadd.s32 %s54, 1
      %p58 = scmp.eq.s32.totalorder %s20, 2
      %p59 = scmp.ne.s32.totalorder %s54, %s56
      %p60 = scmp.eq.s32.totalorder %s20, 0
      %p61 = por %p59, %p60
      %p62 = scmp.ne.s32.totalorder %s54, %s56
      %p63 = scmp.eq.s32.totalorder %s25, 2
      %p64 = por %p62, %p63
      %p65 = scmp.ne.s32.totalorder %s56, %s57
      %p66 = scmp.eq.s32.totalorder %s25, 0
      %p67 = por %p65, %p66
      %p68 = scmp.ne.s32.totalorder %s56, %s57
      %p69 = scmp.eq.s32.totalorder %s26, 2
      %p70 = por %p68, %p69
      %p72 = scmp.ne.s32.totalorder %s57, %s71
      %p73 = scmp.eq.s32.totalorder %s26, 0
      %p74 = por %p72, %p73
      %s76 = sadd.s32 %s75, 1
      %p79 = scmp.eq.s32.totalorder %s20, 2
      %p80 = scmp.ne.s32.totalorder %s75, %s77
      %p81 = scmp.eq.s32.totalorder %s20, 0
      %p82 = por %p80, %p81
      %p83 = scmp.ne.s32.totalorder %s75, %s77
      %p84 = scmp.eq.s32.totalorder %s25, 2
      %p85 = por %p83, %p84
      %p86 = scmp.ne.s32.totalorder %s77, %s78
      %p87 = scmp.eq.s32.totalorder %s25, 0
      %p88 = por %p86, %p87
      %p89 = scmp.ne.s32.totalorder %s77, %s78
      %p90 = scmp.eq.s32.totalorder %s26, 2
      %p91 = por %p89, %p90
      %p93 = scmp.ne.s32.totalorder %s78, %s92
      %p94 = scmp.eq.s32.totalorder %s26, 0
      %p95 = por %p93, %p94
      %s97 = sadd.s32 %s96, 1
      %p100 = scmp.eq.s32.totalorder %s20, 2
      %p101 = scmp.ne.s32.totalorder %s96, %s98
      %p102 = scmp.eq.s32.totalorder %s20, 0
      %p103 = por %p101, %p102
      %p104 = scmp.ne.s32.totalorder %s96, %s98
      %p105 = scmp.eq.s32.totalorder %s25, 2
      %p106 = por %p104, %p105
      %p107 = scmp.ne.s32.totalorder %s98, %s99
      %p108 = scmp.eq.s32.totalorder %s25, 0
      %p109 = por %p107, %p108
      %p110 = scmp.ne.s32.totalorder %s98, %s99
      %p111 = scmp.eq.s32.totalorder %s26, 2
      %p112 = por %p110, %p111
      %p114 = scmp.ne.s32.totalorder %s99, %s113
      %p115 = scmp.eq.s32.totalorder %s26, 0
      %p116 = por %p114, %p115
      %s118 = sadd.s32 %s117, 1
      %p121 = scmp.eq.s32.totalorder %s20, 2
      %p122 = scmp.ne.s32.totalorder %s117, %s119
      %p123 = scmp.eq.s32.totalorder %s20, 0
      %p124 = por %p122, %p123
      %p125 = scmp.ne.s32.totalorder %s117, %s119
      %p126 = scmp.eq.s32.totalorder %s25, 2
      %p127 = por %p125, %p126
      %p128 = scmp.ne.s32.totalorder %s119, %s120
      %p129 = scmp.eq.s32.totalorder %s25, 0
      %p130 = por %p128, %p129
      %p131 = scmp.ne.s32.totalorder %s119, %s120
      %p132 = scmp.eq.s32.totalorder %s26, 2
      %p133 = por %p131, %p132
      %p135 = scmp.ne.s32.totalorder %s120, %s134
      %p136 = scmp.eq.s32.totalorder %s26, 0
      %p137 = por %p135, %p136
      %s139 = sadd.s32 %s138, 1
      %p142 = scmp.eq.s32.totalorder %s20, 2
      %p143 = scmp.ne.s32.totalorder %s138, %s140
      %p144 = scmp.eq.s32.totalorder %s20, 0
      %p145 = por %p143, %p144
      %p146 = scmp.ne.s32.totalorder %s138, %s140
      %p147 = scmp.eq.s32.totalorder %s25, 2
      %p148 = por %p146, %p147
      %p149 = scmp.ne.s32.totalorder %s140, %s141
      %p150 = scmp.eq.s32.totalorder %s25, 0
      %p151 = por %p149, %p150
      %p152 = scmp.ne.s32.totalorder %s140, %s141
      %p153 = scmp.eq.s32.totalorder %s26, 2
      %p154 = por %p152, %p153
      %p156 = scmp.ne.s32.totalorder %s141, %s155
      %p157 = scmp.eq.s32.totalorder %s26, 0
      %p158 = por %p156, %p157
      %s160 = sadd.s32 %s159, 1
      %p163 = scmp.eq.s32.totalorder %s20, 2
      %p164 = scmp.ne.s32.totalorder %s159, %s161
      %p165 = scmp.eq.s32.totalorder %s20, 0
      %p166 = por %p164, %p165
      %p167 = scmp.ne.s32.totalorder %s159, %s161
      %p168 = scmp.eq.s32.totalorder %s25, 2
      %p169 = por %p167, %p168
      %p170 = scmp.ne.s32.totalorder %s161, %s162
      %p171 = scmp.eq.s32.totalorder %s25, 0
      %p172 = por %p170, %p171
      %p173 = scmp.ne.s32.totalorder %s161, %s162
      %p174 = scmp.eq.s32.totalorder %s26, 2
      %p175 = por %p173, %p174
      %p177 = scmp.ne.s32.totalorder %s162, %s176
      %p178 = scmp.eq.s32.totalorder %s26, 0
      %p179 = por %p177, %p178
      %s181 = sadd.s32 %s180, 1
      %p184 = scmp.eq.s32.totalorder %s20, 2
      %p185 = scmp.ne.s32.totalorder %s180, %s182
      %p186 = scmp.eq.s32.totalorder %s20, 0
      %p187 = por %p185, %p186
      %p188 = scmp.ne.s32.totalorder %s180, %s182
      %p189 = scmp.eq.s32.totalorder %s25, 2
      %p190 = por %p188, %p189
      %p191 = scmp.ne.s32.totalorder %s182, %s183
      %p192 = scmp.eq.s32.totalorder %s25, 0
      %p193 = por %p191, %p192
      %p194 = scmp.ne.s32.totalorder %s182, %s183
      %p195 = scmp.eq.s32.totalorder %s26, 2
      %p196 = por %p194, %p195
      %p198 = scmp.ne.s32.totalorder %s183, %s197
      %p199 = scmp.eq.s32.totalorder %s26, 0
      %p200 = por %p198, %p199
      %s202 = sadd.s32 %s201, 1
      %p205 = scmp.eq.s32.totalorder %s20, 2
      %p206 = scmp.ne.s32.totalorder %s201, %s203
      %p207 = scmp.eq.s32.totalorder %s20, 0
      %p208 = por %p206, %p207
      %p209 = scmp.ne.s32.totalorder %s201, %s203
      %p210 = scmp.eq.s32.totalorder %s25, 2
      %p211 = por %p209, %p210
      %p212 = scmp.ne.s32.totalorder %s203, %s204
      %p213 = scmp.eq.s32.totalorder %s25, 0
      %p214 = por %p212, %p213
      %p215 = scmp.ne.s32.totalorder %s203, %s204
      %p216 = scmp.eq.s32.totalorder %s26, 2
      %p217 = por %p215, %p216
      %p219 = scmp.ne.s32.totalorder %s204, %s218
      %p220 = scmp.eq.s32.totalorder %s26, 0
      %p221 = por %p219, %p220
      %s223 = sadd.s32 %s222, 1
      %p226 = scmp.eq.s32.totalorder %s20, 2
      %p227 = scmp.ne.s32.totalorder %s222, %s224
      %p228 = scmp.eq.s32.totalorder %s20, 0
      %p229 = por %p227, %p228
      %p230 = scmp.ne.s32.totalorder %s222, %s224
      %p231 = scmp.eq.s32.totalorder %s25, 2
      %p232 = por %p230, %p231
      %p233 = scmp.ne.s32.totalorder %s224, %s225
      %p234 = scmp.eq.s32.totalorder %s25, 0
      %p235 = por %p233, %p234
      %p236 = scmp.ne.s32.totalorder %s224, %s225
      %p237 = scmp.eq.s32.totalorder %s26, 2
      %p238 = por %p236, %p237
      %p240 = scmp.ne.s32.totalorder %s225, %s239
      %p241 = scmp.eq.s32.totalorder %s26, 0
      %p242 = por %p240, %p241
      %s244 = sadd.s32 %s243, 1
      %p247 = scmp.eq.s32.totalorder %s20, 2
      %p248 = scmp.ne.s32.totalorder %s243, %s245
      %p249 = scmp.eq.s32.totalorder %s20, 0
      %p250 = por %p248, %p249
      %p251 = scmp.ne.s32.totalorder %s243, %s245
      %p252 = scmp.eq.s32.totalorder %s25, 2
      %p253 = por %p251, %p252
      %p254 = scmp.ne.s32.totalorder %s245, %s246
      %p255 = scmp.eq.s32.totalorder %s25, 0
      %p256 = por %p254, %p255
      %p257 = scmp.ne.s32.totalorder %s245, %s246
      %p258 = scmp.eq.s32.totalorder %s26, 2
      %p259 = por %p257, %p258
      %p261 = scmp.ne.s32.totalorder %s246, %s260
      %p262 = scmp.eq.s32.totalorder %s26, 0
      %p263 = por %p261, %p262
      %s264 = ssub.s32 %s20, %s27
      %p265 = scmp.eq.s32.totalorder %s264, 0
      %s267 = sadd.s32 %s266, 1
      %s268 = scalar_select %p265, %s266, %s267
      %p271 = pneg %p265
      %p272 = scmp.eq.s32.totalorder %s20, 2
      %p273 = por %p271, %p272
      %p274 = scmp.ne.s32.totalorder %s266, %s269
      %p275 = scmp.eq.s32.totalorder %s20, 0
      %p276 = por %p274, %p275
      %p277 = scmp.ne.s32.totalorder %s266, %s269
      %p278 = scmp.eq.s32.totalorder %s25, 2
      %p279 = por %p277, %p278
      %p280 = scmp.ne.s32.totalorder %s269, %s270
      %p281 = scmp.eq.s32.totalorder %s25, 0
      %p282 = por %p280, %p281
      %p283 = scmp.ne.s32.totalorder %s269, %s270
      %p284 = scmp.eq.s32.totalorder %s26, 2
      %p285 = por %p283, %p284
      %p287 = scmp.ne.s32.totalorder %s270, %s286
      %p288 = scmp.eq.s32.totalorder %s26, 0
      %p289 = por %p287, %p288
      %p290 = scmp.le.s32.totalorder 1, %s20
      %p291 = scmp.lt.s32.totalorder %s20, 4
      %p292 = pnand %p290, %p291
      %p293 = pneg %p292
      // Predicated region
      $region9: #{tpu_custom_call.1} parent=5 // pred_check
        _
      $region10: #{tpu_custom_call.1} parent=5 // pred_check_branch
        %295 = sbr.rel (%p292) target = $region12
      $region11: #{tpu_custom_call.1} parent=5 // pred_region
        %s296 = ssub.s32 %s20, 1
        // Predicated region
        $region13: #{tpu_custom_call.1} parent=11 // pred_check
          %p297 = pneg %p67
        $region14: #{tpu_custom_call.1} parent=11 // pred_check_branch
          %299 = sbr.rel (%p297) target = $region16
        $region15: #{tpu_custom_call.1} parent=11 // pred_region
          _
        $region16: #{tpu_custom_call.1} parent=11 // pred_fallthru
          _
        // Predicated region
        $region17: #{tpu_custom_call.1} parent=11 // pred_check
          %p300 = pneg %p88
        $region18: #{tpu_custom_call.1} parent=11 // pred_check_branch
          %302 = sbr.rel (%p300) target = $region20
        $region19: #{tpu_custom_call.1} parent=11 // pred_region
          _
        $region20: #{tpu_custom_call.1} parent=11 // pred_fallthru
          _
        // Predicated region
        $region21: #{tpu_custom_call.1} parent=11 // pred_check
          %p303 = pneg %p109
        $region22: #{tpu_custom_call.1} parent=11 // pred_check_branch
          %305 = sbr.rel (%p303) target = $region24
        $region23: #{tpu_custom_call.1} parent=11 // pred_region
          _
        $region24: #{tpu_custom_call.1} parent=11 // pred_fallthru
          _
        // Predicated region
        $region25: #{tpu_custom_call.1} parent=11 // pred_check
          %p306 = pneg %p130
        $region26: #{tpu_custom_call.1} parent=11 // pred_check_branch
          %308 = sbr.rel (%p306) target = $region28
        $region27: #{tpu_custom_call.1} parent=11 // pred_region
          _
        $region28: #{tpu_custom_call.1} parent=11 // pred_fallthru
          _
        // Predicated region
        $region29: #{tpu_custom_call.1} parent=11 // pred_check
          %p309 = pneg %p151
        $region30: #{tpu_custom_call.1} parent=11 // pred_check_branch
          %311 = sbr.rel (%p309) target = $region32
        $region31: #{tpu_custom_call.1} parent=11 // pred_region
          _
        $region32: #{tpu_custom_call.1} parent=11 // pred_fallthru
          _
        // Predicated region
        $region33: #{tpu_custom_call.1} parent=11 // pred_check
          %p312 = pneg %p172
        $region34: #{tpu_custom_call.1} parent=11 // pred_check_branch
          %314 = sbr.rel (%p312) target = $region36
        $region35: #{tpu_custom_call.1} parent=11 // pred_region
          _
        $region36: #{tpu_custom_call.1} parent=11 // pred_fallthru
          _
        // Predicated region
        $region37: #{tpu_custom_call.1} parent=11 // pred_check
          %p315 = pneg %p193
        $region38: #{tpu_custom_call.1} parent=11 // pred_check_branch
          %317 = sbr.rel (%p315) target = $region40
        $region39: #{tpu_custom_call.1} parent=11 // pred_region
          _
        $region40: #{tpu_custom_call.1} parent=11 // pred_fallthru
          _
        // Predicated region
        $region41: #{tpu_custom_call.1} parent=11 // pred_check
          %p318 = pneg %p214
        $region42: #{tpu_custom_call.1} parent=11 // pred_check_branch
          %320 = sbr.rel (%p318) target = $region44
        $region43: #{tpu_custom_call.1} parent=11 // pred_region
          _
        $region44: #{tpu_custom_call.1} parent=11 // pred_fallthru
          _
        // Predicated region
        $region45: #{tpu_custom_call.1} parent=11 // pred_check
          %p321 = pneg %p235
        $region46: #{tpu_custom_call.1} parent=11 // pred_check_branch
          %323 = sbr.rel (%p321) target = $region48
        $region47: #{tpu_custom_call.1} parent=11 // pred_region
          _
        $region48: #{tpu_custom_call.1} parent=11 // pred_fallthru
          _
        // Predicated region
        $region49: #{tpu_custom_call.1} parent=11 // pred_check
          %p324 = pneg %p256
        $region50: #{tpu_custom_call.1} parent=11 // pred_check_branch
          %326 = sbr.rel (%p324) target = $region52
        $region51: #{tpu_custom_call.1} parent=11 // pred_region
          _
        $region52: #{tpu_custom_call.1} parent=11 // pred_fallthru
          _
      $region12: #{tpu_custom_call.1} parent=5 // pred_fallthru
        _
      %p327 = scmp.lt.s32.totalorder %s20, 3
      // Predicated region
      $region53: #{tpu_custom_call.1} parent=5 // pred_check
        %p328 = pneg %p327
      $region54: #{tpu_custom_call.1} parent=5 // pred_check_branch
        %330 = sbr.rel (%p328) target = $region56
      $region55: #{tpu_custom_call.1} parent=5 // pred_region
        // Predicated region
        $region57: #{tpu_custom_call.1} parent=55 // pred_check
          %p331 = pneg %p40
        $region58: #{tpu_custom_call.1} parent=55 // pred_check_branch
          %333 = sbr.rel (%p331) target = $region60
        $region59: #{tpu_custom_call.1} parent=55 // pred_region
          %p334 = scmp.lt.s32.totalorder %s20, 2
          %s335 = scalar_select %p334, %s20, 2
          %s336 = smul.addr %s335, 8
          %s337 = scalar_lea.vmem %s0, %s336
        $region60: #{tpu_custom_call.1} parent=55 // pred_fallthru
          _
      $region56: #{tpu_custom_call.1} parent=5 // pred_fallthru
        _
      %p338 = scmp.le.s32.totalorder 1, %s20
      %p339 = scmp.lt.s32.totalorder %s20, 4
      %p340 = pnand %p338, %p339
      %p341 = pneg %p340
      // Predicated region
      $region61: #{tpu_custom_call.1} parent=5 // pred_check
        _
      $region62: #{tpu_custom_call.1} parent=5 // pred_check_branch
        %343 = sbr.rel (%p340) target = $region64
      $region63: #{tpu_custom_call.1} parent=5 // pred_region
        %s344 = ssub.s32 %s20, 1
        %p345 = scmp.lt.s32.totalorder %s25, 2
        %s346 = scalar_select %p345, %s25, 2
        %s347 = smul.addr %s346, 8
        %s348 = scalar_lea.vmem %s0, %s347
        %p349 = pneg %p46
        %p350 = pneg %p43
        %p351 = pneg %p67
        %p352 = pneg %p64
        %p353 = pneg %p88
        %p354 = pneg %p85
        %p355 = pneg %p109
        %p356 = pneg %p106
        %p357 = pneg %p130
        %p358 = pneg %p127
        %p359 = pneg %p151
        %p360 = pneg %p148
        %p361 = pneg %p172
        %p362 = pneg %p169
        %p363 = pneg %p193
        %p364 = pneg %p190
        %p365 = pneg %p214
        %p366 = pneg %p211
        %p367 = pneg %p235
        %p368 = pneg %p232
        %p369 = pneg %p256
        %p370 = pneg %p253
        %p371 = pneg %p282
        %p372 = pneg %p279
        %s373 = sand.u32 %s269, 1
        %s374 = scalar_lea.sflag [#allocation3], %s373
        %s375 = sand.u32 %s269, 1
        %s376 = smul.addr %s375, 28
        %s377 = scalar_lea.vmem [#allocation2], %s376
        %p378 = scmp.lt.s32.totalorder %s25, 2
        %s379 = scalar_select %p378, %s25, 2
        %s380 = smul.addr %s379, 8
        %s381 = scalar_lea.vmem %s0, %s380
        %v383 = vld [vmem:[%s381] sm:$0xff]
        %v384 = vld [vmem:[%s1] sm:$0x3]
        %386 = vset.pattern.permute.xlu0 0
        %387 = vperm.xlu0 %386, %v383
        %v388 = vpop.permute.xlu0 %387
        %v390 = vperm.slane %v384, 0
        %v391 = vmul.f32 %v388, %v390
        %392 = vset.pattern.permute.xlu0 1
        %393 = vperm.xlu0 %392, %v383
        %v394 = vpop.permute.xlu0 %393
        %v396 = vperm.slane %v384, 1
        %v397 = vmul.f32 %v394, %v396
        %v398 = vadd.f32 %v391, %v397
        %v399 = vld [vmem:[%s2] sm:$0x1]
        %v401 = vperm.slane %v399, 0
        %v403 = vadd.f32 %v398, %v401
        %v404 = vmax.f32 %v403, 0.0
        %v405 = vpack.c.bf16 %v404, %v404
        %v406 = vld [vmem:[%s3] sm:$0xf]
        %v407 = vld [vmem:[%s3 + $0x4] sm:$0xf]
        %v408 = vld [vmem:[%s4] sm:$0x1]
        %v410 = vperm.slane %v408, 0
        %v414 = vunpack.c.l.b16 %v406
        %v415 = vunpack.c.l.b16 %v407
        %v416 = vpack.c.b16 %v415, %v414
        %vm418 = vcmask 130048
        %v420 = vsel %vm418, %v405, 0
        %422 = vmatpush.bf16.msra.mxu0 0
        %423 = vmatpush.bf16.msra.mxu0 0
        %424 = vmatpush.bf16.msra.mxu0 0
        %425 = vmatpush.bf16.msra.mxu0 0
        %426 = vmatpush.bf16.msra.mxu0 0
        %427 = vmatpush.bf16.msra.mxu0 0
        %428 = vmatpush.bf16.msra.mxu0 0
        %429 = vmatpush.bf16.msra.mxu0 %v416
        %430 = vmatmul.bf16.gmra.mxu0 %v420
        %v431 = vpop.f32.mrf.mxu0
        %v432 = vadd.f32 %v410, %v431
        %v433 = vpop.f32.mrf.mxu0
        %434 = vdwg.mxu0
        %v435 = vmax.f32 %v432, 0.0
        %v436 = vpack.c.bf16 %v435, %v435
        %v437 = vld [vmem:[%s5] sm:$0xf]
        %v438 = vld [vmem:[%s5 + $0x4] sm:$0xf]
        %v439 = vld [vmem:[%s5 + $0x8] sm:$0xf]
        %v440 = vld [vmem:[%s5 + $0xc] sm:$0xf]
        %v441 = vld [vmem:[%s6] sm:$0x1]
        %v443 = vperm.slane %v441, 0
        %v449 = vunpack.c.l.b16 %v437
        %v450 = vunpack.c.l.b16 %v438
        %v451 = vunpack.c.l.b16 %v439
        %v452 = vunpack.c.l.b16 %v440
        %v453 = vpack.c.b16 %v450, %v449
        %v454 = vpack.c.b16 %v452, %v451
        %vm457 = vcmask 261120
        %v459 = vsel %vm457, %v436, 0
        %461 = vmatpush.bf16.msra.mxu0 0
        %462 = vmatpush.bf16.msra.mxu0 0
        %463 = vmatpush.bf16.msra.mxu0 0
        %464 = vmatpush.bf16.msra.mxu0 0
        %465 = vmatpush.bf16.msra.mxu0 0
        %466 = vmatpush.bf16.msra.mxu0 0
        %467 = vmatpush.bf16.msra.mxu0 %v454
        %468 = vmatpush.bf16.msra.mxu0 %v453
        %469 = vmatmul.bf16.gmra.mxu0 %v459
        %v470 = vpop.f32.mrf.mxu0
        %v471 = vadd.f32 %v443, %v470
        %v472 = vpop.f32.mrf.mxu0
        %473 = vdwg.mxu0
        %v474 = vmax.f32 %v471, 0.0
        %v475 = vpack.c.bf16 %v474, %v474
        %v476 = vld [vmem:[%s7] sm:$0xf]
        %v477 = vld [vmem:[%s7 + $0x4] sm:$0xf]
        %v478 = vld [vmem:[%s7 + $0x8] sm:$0xf]
        %v479 = vld [vmem:[%s7 + $0xc] sm:$0xf]
        %v480 = vld [vmem:[%s7 + $0x10] sm:$0xf]
        %v481 = vld [vmem:[%s7 + $0x14] sm:$0xf]
        %v482 = vld [vmem:[%s7 + $0x18] sm:$0xf]
        %v483 = vld [vmem:[%s7 + $0x1c] sm:$0xf]
        %v484 = vld [vmem:[%s8] sm:$0x1]
        %v486 = vperm.slane %v484, 0
        %v496 = vunpack.c.l.b16 %v476
        %v497 = vunpack.c.l.b16 %v477
        %v498 = vunpack.c.l.b16 %v478
        %v499 = vunpack.c.l.b16 %v479
        %v500 = vunpack.c.l.b16 %v480
        %v501 = vunpack.c.l.b16 %v481
        %v502 = vunpack.c.l.b16 %v482
        %v503 = vunpack.c.l.b16 %v483
        %v504 = vpack.c.b16 %v497, %v496
        %v505 = vpack.c.b16 %v499, %v498
        %v506 = vpack.c.b16 %v501, %v500
        %v507 = vpack.c.b16 %v503, %v502
        %vm512 = vcmask 523264
        %v514 = vsel %vm512, %v475, 0
        %516 = vmatpush.bf16.msra.mxu0 0
        %517 = vmatpush.bf16.msra.mxu0 0
        %518 = vmatpush.bf16.msra.mxu0 0
        %519 = vmatpush.bf16.msra.mxu0 0
        %520 = vmatpush.bf16.msra.mxu0 %v507
        %521 = vmatpush.bf16.msra.mxu0 %v506
        %522 = vmatpush.bf16.msra.mxu0 %v505
        %523 = vmatpush.bf16.msra.mxu0 %v504
        %524 = vmatmul.bf16.gmra.mxu0 %v514
        %v525 = vpop.f32.mrf.mxu0
        %v526 = vadd.f32 %v486, %v525
        %v527 = vpop.f32.mrf.mxu0
        %528 = vdwg.mxu0
        %v529 = vmax.f32 %v526, 0.0
        %v530 = vpack.c.bf16 %v529, %v529
        %v531 = vld [vmem:[%s9] sm:$0xff]
        %v532 = vld [vmem:[%s9 + $0x8] sm:$0xff]
        %v533 = vld [vmem:[%s9 + $0x10] sm:$0xff]
        %v534 = vld [vmem:[%s9 + $0x18] sm:$0xf]
        %v535 = vld [vmem:[%s9 + $0x1c] sm:$0xff]
        %v536 = vld [vmem:[%s9 + $0x24] sm:$0xff]
        %v537 = vld [vmem:[%s9 + $0x2c] sm:$0xff]
        %v538 = vld [vmem:[%s9 + $0x34] sm:$0xf]
        %v539 = vld [vmem:[%s9 + $0x38] sm:$0xff]
        %v540 = vld [vmem:[%s9 + $0x40] sm:$0xff]
        %v541 = vld [vmem:[%s9 + $0x48] sm:$0xff]
        %v542 = vld [vmem:[%s9 + $0x50] sm:$0xf]
        %v543 = vld [vmem:[%s9 + $0x54] sm:$0xff]
        %v544 = vld [vmem:[%s9 + $0x5c] sm:$0xff]
        %v545 = vld [vmem:[%s9 + $0x64] sm:$0xff]
        %v546 = vld [vmem:[%s9 + $0x6c] sm:$0xf]
        %v547 = vld [vmem:[%s9 + $0x70] sm:$0xff]
        %v548 = vld [vmem:[%s9 + $0x78] sm:$0xff]
        %v549 = vld [vmem:[%s9 + $0x80] sm:$0xff]
        %v550 = vld [vmem:[%s9 + $0x88] sm:$0xf]
        %v551 = vld [vmem:[%s9 + $0x8c] sm:$0xff]
        %v552 = vld [vmem:[%s9 + $0x94] sm:$0xff]
        %v553 = vld [vmem:[%s9 + $0x9c] sm:$0xff]
        %v554 = vld [vmem:[%s9 + $0xa4] sm:$0xf]
        %v555 = vld [vmem:[%s9 + $0xa8] sm:$0xff]
        %v556 = vld [vmem:[%s9 + $0xb0] sm:$0xff]
        %v557 = vld [vmem:[%s9 + $0xb8] sm:$0xff]
        %v558 = vld [vmem:[%s9 + $0xc0] sm:$0xf]
        %v559 = vld [vmem:[%s9 + $0xc4] sm:$0xff]
        %v560 = vld [vmem:[%s9 + $0xcc] sm:$0xff]
        %v561 = vld [vmem:[%s9 + $0xd4] sm:$0xff]
        %v562 = vld [vmem:[%s9 + $0xdc] sm:$0xf]
        %v563 = vld [vmem:[%s9 + $0xe0] sm:$0xff]
        %v564 = vld [vmem:[%s9 + $0xe8] sm:$0xff]
        %v565 = vld [vmem:[%s9 + $0xf0] sm:$0xff]
        %v566 = vld [vmem:[%s9 + $0xf8] sm:$0xf]
        %v567 = vld [vmem:[%s9 + $0xfc] sm:$0xff]
        %v568 = vld [vmem:[%s9 + $0x104] sm:$0xff]
        %v569 = vld [vmem:[%s9 + $0x10c] sm:$0xff]
        %v570 = vld [vmem:[%s9 + $0x114] sm:$0xf]
        %v571 = vld [vmem:[%s9 + $0x118] sm:$0xff]
        %v572 = vld [vmem:[%s9 + $0x120] sm:$0xff]
        %v573 = vld [vmem:[%s9 + $0x128] sm:$0xff]
        %v574 = vld [vmem:[%s9 + $0x130] sm:$0xf]
        %v575 = vld [vmem:[%s9 + $0x134] sm:$0xff]
        %v576 = vld [vmem:[%s9 + $0x13c] sm:$0xff]
        %v577 = vld [vmem:[%s9 + $0x144] sm:$0xff]
        %v578 = vld [vmem:[%s9 + $0x14c] sm:$0xf]
        %v579 = vld [vmem:[%s9 + $0x150] sm:$0xff]
        %v580 = vld [vmem:[%s9 + $0x158] sm:$0xff]
        %v581 = vld [vmem:[%s9 + $0x160] sm:$0xff]
        %v582 = vld [vmem:[%s9 + $0x168] sm:$0xf]
        %v583 = vld [vmem:[%s9 + $0x16c] sm:$0xff]
        %v584 = vld [vmem:[%s9 + $0x174] sm:$0xff]
        %v585 = vld [vmem:[%s9 + $0x17c] sm:$0xff]
        %v586 = vld [vmem:[%s9 + $0x184] sm:$0xf]
        %v587 = vld [vmem:[%s9 + $0x188] sm:$0xff]
        %v588 = vld [vmem:[%s9 + $0x190] sm:$0xff]
        %v589 = vld [vmem:[%s9 + $0x198] sm:$0xff]
        %v590 = vld [vmem:[%s9 + $0x1a0] sm:$0xf]
        %v591 = vld [vmem:[%s9 + $0x1a4] sm:$0xff]
        %v592 = vld [vmem:[%s9 + $0x1ac] sm:$0xff]
        %v593 = vld [vmem:[%s9 + $0x1b4] sm:$0xff]
        %v594 = vld [vmem:[%s9 + $0x1bc] sm:$0xf]
        %v595 = vld [vmem:[%s10] sm:$0x7f]
        %v597 = vperm.slane %v595, 0
        %v598 = vperm.slane %v595, 1
        %v599 = vperm.slane %v595, 2
        %v600 = vperm.slane %v595, 3
        %v601 = vperm.slane %v595, 4
        %v602 = vperm.slane %v595, 5
        %v603 = vperm.slane %v595, 6
        %v675 = vunpack.c.l.b16 %v531
        %v676 = vunpack.c.h.b16 %v531
        %v677 = vunpack.c.l.b16 %v532
        %v678 = vunpack.c.h.b16 %v532
        %v679 = vunpack.c.l.b16 %v533
        %v680 = vunpack.c.h.b16 %v533
        %v681 = vunpack.c.l.b16 %v534
        %v682 = vunpack.c.l.b16 %v535
        %v683 = vunpack.c.h.b16 %v535
        %v684 = vunpack.c.l.b16 %v536
        %v685 = vunpack.c.h.b16 %v536
        %v686 = vunpack.c.l.b16 %v537
        %v687 = vunpack.c.h.b16 %v537
        %v688 = vunpack.c.l.b16 %v538
        %v689 = vunpack.c.l.b16 %v539
        %v690 = vunpack.c.h.b16 %v539
        %v691 = vunpack.c.l.b16 %v540
        %v692 = vunpack.c.h.b16 %v540
        %v693 = vunpack.c.l.b16 %v541
        %v694 = vunpack.c.h.b16 %v541
        %v695 = vunpack.c.l.b16 %v542
        %v696 = vunpack.c.l.b16 %v543
        %v697 = vunpack.c.h.b16 %v543
        %v698 = vunpack.c.l.b16 %v544
        %v699 = vunpack.c.h.b16 %v544
        %v700 = vunpack.c.l.b16 %v545
        %v701 = vunpack.c.h.b16 %v545
        %v702 = vunpack.c.l.b16 %v546
        %v703 = vunpack.c.l.b16 %v547
        %v704 = vunpack.c.h.b16 %v547
        %v705 = vunpack.c.l.b16 %v548
        %v706 = vunpack.c.h.b16 %v548
        %v707 = vunpack.c.l.b16 %v549
        %v708 = vunpack.c.h.b16 %v549
        %v709 = vunpack.c.l.b16 %v550
        %v710 = vunpack.c.l.b16 %v551
        %v711 = vunpack.c.h.b16 %v551
        %v712 = vunpack.c.l.b16 %v552
        %v713 = vunpack.c.h.b16 %v552
        %v714 = vunpack.c.l.b16 %v553
        %v715 = vunpack.c.h.b16 %v553
        %v716 = vunpack.c.l.b16 %v554
        %v717 = vunpack.c.l.b16 %v555
        %v718 = vunpack.c.h.b16 %v555
        %v719 = vunpack.c.l.b16 %v556
        %v720 = vunpack.c.h.b16 %v556
        %v721 = vunpack.c.l.b16 %v557
        %v722 = vunpack.c.h.b16 %v557
        %v723 = vunpack.c.l.b16 %v558
        %v724 = vunpack.c.l.b16 %v559
        %v725 = vunpack.c.h.b16 %v559
        %v726 = vunpack.c.l.b16 %v560
        %v727 = vunpack.c.h.b16 %v560
        %v728 = vunpack.c.l.b16 %v561
        %v729 = vunpack.c.h.b16 %v561
        %v730 = vunpack.c.l.b16 %v562
        %v731 = vunpack.c.l.b16 %v563
        %v732 = vunpack.c.h.b16 %v563
        %v733 = vunpack.c.l.b16 %v564
        %v734 = vunpack.c.h.b16 %v564
        %v735 = vunpack.c.l.b16 %v565
        %v736 = vunpack.c.h.b16 %v565
        %v737 = vunpack.c.l.b16 %v566
        %v738 = vunpack.c.l.b16 %v567
        %v739 = vunpack.c.h.b16 %v567
        %v740 = vunpack.c.l.b16 %v568
        %v741 = vunpack.c.h.b16 %v568
        %v742 = vunpack.c.l.b16 %v569
        %v743 = vunpack.c.h.b16 %v569
        %v744 = vunpack.c.l.b16 %v570
        %v745 = vunpack.c.l.b16 %v571
        %v746 = vunpack.c.h.b16 %v571
        %v747 = vunpack.c.l.b16 %v572
        %v748 = vunpack.c.h.b16 %v572
        %v749 = vunpack.c.l.b16 %v573
        %v750 = vunpack.c.h.b16 %v573
        %v751 = vunpack.c.l.b16 %v574
        %v752 = vunpack.c.l.b16 %v575
        %v753 = vunpack.c.h.b16 %v575
        %v754 = vunpack.c.l.b16 %v576
        %v755 = vunpack.c.h.b16 %v576
        %v756 = vunpack.c.l.b16 %v577
        %v757 = vunpack.c.h.b16 %v577
        %v758 = vunpack.c.l.b16 %v578
        %v759 = vunpack.c.l.b16 %v579
        %v760 = vunpack.c.h.b16 %v579
        %v761 = vunpack.c.l.b16 %v580
        %v762 = vunpack.c.h.b16 %v580
        %v763 = vunpack.c.l.b16 %v581
        %v764 = vunpack.c.h.b16 %v581
        %v765 = vunpack.c.l.b16 %v582
        %v766 = vunpack.c.l.b16 %v583
        %v767 = vunpack.c.h.b16 %v583
        %v768 = vunpack.c.l.b16 %v584
        %v769 = vunpack.c.h.b16 %v584
        %v770 = vunpack.c.l.b16 %v585
        %v771 = vunpack.c.h.b16 %v585
        %v772 = vunpack.c.l.b16 %v586
        %v773 = vunpack.c.l.b16 %v587
        %v774 = vunpack.c.h.b16 %v587
        %v775 = vunpack.c.l.b16 %v588
        %v776 = vunpack.c.h.b16 %v588
        %v777 = vunpack.c.l.b16 %v589
        %v778 = vunpack.c.h.b16 %v589
        %v779 = vunpack.c.l.b16 %v590
        %v780 = vunpack.c.l.b16 %v591
        %v781 = vunpack.c.h.b16 %v591
        %v782 = vunpack.c.l.b16 %v592
        %v783 = vunpack.c.h.b16 %v592
        %v784 = vunpack.c.l.b16 %v593
        %v785 = vunpack.c.h.b16 %v593
        %v786 = vunpack.c.l.b16 %v594
        %v787 = vpack.c.b16 %v682, %v675
        %v788 = vpack.c.b16 %v683, %v676
        %v789 = vpack.c.b16 %v684, %v677
        %v790 = vpack.c.b16 %v685, %v678
        %v791 = vpack.c.b16 %v686, %v679
        %v792 = vpack.c.b16 %v687, %v680
        %v793 = vpack.c.b16 %v688, %v681
        %v794 = vpack.c.b16 %v696, %v689
        %v795 = vpack.c.b16 %v697, %v690
        %v796 = vpack.c.b16 %v698, %v691
        %v797 = vpack.c.b16 %v699, %v692
        %v798 = vpack.c.b16 %v700, %v693
        %v799 = vpack.c.b16 %v701, %v694
        %v800 = vpack.c.b16 %v702, %v695
        %v801 = vpack.c.b16 %v710, %v703
        %v802 = vpack.c.b16 %v711, %v704
        %v803 = vpack.c.b16 %v712, %v705
        %v804 = vpack.c.b16 %v713, %v706
        %v805 = vpack.c.b16 %v714, %v707
        %v806 = vpack.c.b16 %v715, %v708
        %v807 = vpack.c.b16 %v716, %v709
        %v808 = vpack.c.b16 %v724, %v717
        %v809 = vpack.c.b16 %v725, %v718
        %v810 = vpack.c.b16 %v726, %v719
        %v811 = vpack.c.b16 %v727, %v720
        %v812 = vpack.c.b16 %v728, %v721
        %v813 = vpack.c.b16 %v729, %v722
        %v814 = vpack.c.b16 %v730, %v723
        %v815 = vpack.c.b16 %v738, %v731
        %v816 = vpack.c.b16 %v739, %v732
        %v817 = vpack.c.b16 %v740, %v733
        %v818 = vpack.c.b16 %v741, %v734
        %v819 = vpack.c.b16 %v742, %v735
        %v820 = vpack.c.b16 %v743, %v736
        %v821 = vpack.c.b16 %v744, %v737
        %v822 = vpack.c.b16 %v752, %v745
        %v823 = vpack.c.b16 %v753, %v746
        %v824 = vpack.c.b16 %v754, %v747
        %v825 = vpack.c.b16 %v755, %v748
        %v826 = vpack.c.b16 %v756, %v749
        %v827 = vpack.c.b16 %v757, %v750
        %v828 = vpack.c.b16 %v758, %v751
        %v829 = vpack.c.b16 %v766, %v759
        %v830 = vpack.c.b16 %v767, %v760
        %v831 = vpack.c.b16 %v768, %v761
        %v832 = vpack.c.b16 %v769, %v762
        %v833 = vpack.c.b16 %v770, %v763
        %v834 = vpack.c.b16 %v771, %v764
        %v835 = vpack.c.b16 %v772, %v765
        %v836 = vpack.c.b16 %v780, %v773
        %v837 = vpack.c.b16 %v781, %v774
        %v838 = vpack.c.b16 %v782, %v775
        %v839 = vpack.c.b16 %v783, %v776
        %v840 = vpack.c.b16 %v784, %v777
        %v841 = vpack.c.b16 %v785, %v778
        %v842 = vpack.c.b16 %v786, %v779
        %899 = vmatpush.bf16.msra.mxu0 %v836
        %900 = vmatpush.bf16.msra.mxu0 %v829
        %901 = vmatpush.bf16.msra.mxu0 %v822
        %902 = vmatpush.bf16.msra.mxu0 %v815
        %903 = vmatpush.bf16.msra.mxu0 %v808
        %904 = vmatpush.bf16.msra.mxu0 %v801
        %905 = vmatpush.bf16.msra.mxu0 %v794
        %906 = vmatpush.bf16.msra.mxu0 %v787
        %907 = vmatmul.bf16.gmra.mxu0 %v530
        %v908 = vpop.f32.mrf.mxu0
        %v909 = vadd.f32 %v597, %v908
        %v910 = vpop.f32.mrf.mxu0
        %911 = vdwg.mxu0
        %912 = vmatpush.bf16.msra.mxu0 %v837
        %913 = vmatpush.bf16.msra.mxu0 %v830
        %914 = vmatpush.bf16.msra.mxu0 %v823
        %915 = vmatpush.bf16.msra.mxu0 %v816
        %916 = vmatpush.bf16.msra.mxu0 %v809
        %917 = vmatpush.bf16.msra.mxu0 %v802
        %918 = vmatpush.bf16.msra.mxu0 %v795
        %919 = vmatpush.bf16.msra.mxu0 %v788
        %920 = vmatmul.bf16.gmra.mxu0 %v530
        %v921 = vpop.f32.mrf.mxu0
        %v922 = vadd.f32 %v598, %v921
        %v923 = vpop.f32.mrf.mxu0
        %924 = vdwg.mxu0
        %925 = vmatpush.bf16.msra.mxu0 %v838
        %926 = vmatpush.bf16.msra.mxu0 %v831
        %927 = vmatpush.bf16.msra.mxu0 %v824
        %928 = vmatpush.bf16.msra.mxu0 %v817
        %929 = vmatpush.bf16.msra.mxu0 %v810
        %930 = vmatpush.bf16.msra.mxu0 %v803
        %931 = vmatpush.bf16.msra.mxu0 %v796
        %932 = vmatpush.bf16.msra.mxu0 %v789
        %933 = vmatmul.bf16.gmra.mxu0 %v530
        %v934 = vpop.f32.mrf.mxu0
        %v935 = vadd.f32 %v599, %v934
        %v936 = vpop.f32.mrf.mxu0
        %937 = vdwg.mxu0
        %938 = vmatpush.bf16.msra.mxu0 %v839
        %939 = vmatpush.bf16.msra.mxu0 %v832
        %940 = vmatpush.bf16.msra.mxu0 %v825
        %941 = vmatpush.bf16.msra.mxu0 %v818
        %942 = vmatpush.bf16.msra.mxu0 %v811
        %943 = vmatpush.bf16.msra.mxu0 %v804
        %944 = vmatpush.bf16.msra.mxu0 %v797
        %945 = vmatpush.bf16.msra.mxu0 %v790
        %946 = vmatmul.bf16.gmra.mxu0 %v530
        %v947 = vpop.f32.mrf.mxu0
        %v948 = vadd.f32 %v600, %v947
        %v949 = vpop.f32.mrf.mxu0
        %950 = vdwg.mxu0
        %951 = vmatpush.bf16.msra.mxu0 %v840
        %952 = vmatpush.bf16.msra.mxu0 %v833
        %953 = vmatpush.bf16.msra.mxu0 %v826
        %954 = vmatpush.bf16.msra.mxu0 %v819
        %955 = vmatpush.bf16.msra.mxu0 %v812
        %956 = vmatpush.bf16.msra.mxu0 %v805
        %957 = vmatpush.bf16.msra.mxu0 %v798
        %958 = vmatpush.bf16.msra.mxu0 %v791
        %959 = vmatmul.bf16.gmra.mxu0 %v530
        %v960 = vpop.f32.mrf.mxu0
        %v961 = vadd.f32 %v601, %v960
        %v962 = vpop.f32.mrf.mxu0
        %963 = vdwg.mxu0
        %964 = vmatpush.bf16.msra.mxu0 %v841
        %965 = vmatpush.bf16.msra.mxu0 %v834
        %966 = vmatpush.bf16.msra.mxu0 %v827
        %967 = vmatpush.bf16.msra.mxu0 %v820
        %968 = vmatpush.bf16.msra.mxu0 %v813
        %969 = vmatpush.bf16.msra.mxu0 %v806
        %970 = vmatpush.bf16.msra.mxu0 %v799
        %971 = vmatpush.bf16.msra.mxu0 %v792
        %972 = vmatmul.bf16.gmra.mxu0 %v530
        %v973 = vpop.f32.mrf.mxu0
        %v974 = vadd.f32 %v602, %v973
        %v975 = vpop.f32.mrf.mxu0
        %976 = vdwg.mxu0
        %977 = vmatpush.bf16.msra.mxu0 %v842
        %978 = vmatpush.bf16.msra.mxu0 %v835
        %979 = vmatpush.bf16.msra.mxu0 %v828
        %980 = vmatpush.bf16.msra.mxu0 %v821
        %981 = vmatpush.bf16.msra.mxu0 %v814
        %982 = vmatpush.bf16.msra.mxu0 %v807
        %983 = vmatpush.bf16.msra.mxu0 %v800
        %984 = vmatpush.bf16.msra.mxu0 %v793
        %985 = vmatmul.bf16.gmra.mxu0 %v530
        %v986 = vpop.f32.mrf.mxu0
        %v987 = vadd.f32 %v603, %v986
        %v988 = vpop.f32.mrf.mxu0
        %989 = vdwg.mxu0
        %v990 = vpack.c.bf16 %v922, %v909
        %v991 = vpack.c.bf16 %v948, %v935
        %v992 = vpack.c.bf16 %v974, %v961
        %v993 = vpack.c.bf16 %v987, %v987
        %994 = vst [vmem:[%s377] sm:$0xff] %v990
        %995 = vst [vmem:[%s377 + $0x8] sm:$0xff] %v991
        %996 = vst [vmem:[%s377 + $0x10] sm:$0xff] %v992
        %vm997 = vcmask 125952
        %998 = vst.msk [vmem:[%s377 + $0x18] sm:$0xf] %vm997, %v993
        %s999 = sand.u32 %s269, 1
        %s1000 = scalar_lea.sflag [#allocation3], %s999
        %s1001 = sand.u32 %s269, 1
        %s1002 = smul.addr %s1001, 28
        %s1003 = scalar_lea.vmem [#allocation2], %s1002
        // Predicated region
        $region65: #{tpu_custom_call.1} parent=63 // pred_check
          %p1004 = pneg %p279
        $region66: #{tpu_custom_call.1} parent=63 // pred_check_branch
          %1006 = sbr.rel (%p1004) target = $region68
        $region67: #{tpu_custom_call.1} parent=63 // pred_region
          %1008 = vsyncadd %s1000, 0
          %s1009 = smul.addr %s25, 7
          %s1010 = smul.addr %s1009, 4
          %s1011 = scalar_lea.hbm %s11, %s1010
          %s1013 = sshll.u32 %s1003, 4
          %s1014 = int_to_ptr.vmem [resolvable:$true] %s1013
          %s1015 = sshll.u32 %s1011, 4
          %s1016 = int_to_ptr.hbm [resolvable:$true] %s1015
          %1018 = dma.vmem_to_hbm [thread:$0]  %s1014, 448, %s1016, %s1000
        $region68: #{tpu_custom_call.1} parent=63 // pred_fallthru
          _
      $region64: #{tpu_custom_call.1} parent=5 // pred_fallthru
        _
      %p1019 = scmp.le.s32.totalorder 2, %s20
      // Predicated region
      $region69: #{tpu_custom_call.1} parent=5 // pred_check
        %p1020 = pneg %p1019
      $region70: #{tpu_custom_call.1} parent=5 // pred_check_branch
        %1022 = sbr.rel (%p1020) target = $region72
      $region71: #{tpu_custom_call.1} parent=5 // pred_region
        %s1023 = ssub.s32 %s20, 2
        // Predicated region
        $region73: #{tpu_custom_call.1} parent=71 // pred_check
          %p1024 = pneg %p285
        $region74: #{tpu_custom_call.1} parent=71 // pred_check_branch
          %1026 = sbr.rel (%p1024) target = $region76
        $region75: #{tpu_custom_call.1} parent=71 // pred_region
          %s1027 = sand.u32 %s270, 1
          %s1028 = scalar_lea.sflag [#allocation3], %s1027
          %s1029 = sand.u32 %s270, 1
          %s1030 = smul.addr %s1029, 28
          %s1031 = scalar_lea.vmem [#allocation2], %s1030
          %1033 = dma.done %s1028, 448
        $region76: #{tpu_custom_call.1} parent=71 // pred_fallthru
          _
      $region72: #{tpu_custom_call.1} parent=5 // pred_fallthru
        _
    $region6: #{tpu_custom_call.1} parent=1 // loop_footer
      %s24 = sadd.s32 1, %s20
    $region7: #{tpu_custom_call.1} parent=1 // loop_footer_branch
      %19 = sbr.rel target = $region3
    $region8: #{tpu_custom_call.1} parent=1 // loop_exit
      _
    %1034 = vsyncpa [#allocation3], 1
    %s1035 = scalar_lea.sflag [#allocation3], 1
    %1036 = vsyncpa %s1035, 1

</llo_original>
